<compile_context>
chip_gen: v6e
topology: v6e:2x2x1
jax: 0.10.0
libtpu: 0.0.40
codegen_flags: <defaults>
</compile_context>

<pallas_src>
import jax
import jax.numpy as jnp
from jax.experimental import pallas as pl
from jax.experimental.pallas import tpu as pltpu

LANES = 128          # slab / fused-state lane width (one f32 vreg row)
BN_EPS = 1e-5


def _round_up(x, m):
    return (x + m - 1) // m * m


# ----------------------------------------------------------------------------
# Packed parameter slab layout (single contiguous (rows, 128) f32 array).
# ----------------------------------------------------------------------------
def slab_layout(H, L, ds, dp, FC):
    SW = 2 * L * H                        # fused recurrent state width
    # TODO(synk): configs wider than one 128-lane vreg row need a multi-tile slab.
    assert SW <= LANES and 2 * FC <= LANES and 2 * H <= LANES
    off_win = LANES                       # M always occupies LANES rows (zero-padded)
    off_bias = off_win + ds + dp          # one positioned bias row per RNN layer
    off_fcw = _round_up(off_bias + L, 8)  # [fc1 | fc2] paired along lanes
    r12 = max(2 * H, FC)
    off_fcw2 = off_fcw + r12              # [fc3 | fc4]
    off_fcb = off_fcw2 + FC               # bias rows + fc5 row
    rows = _round_up(off_fcb + 3, 8)
    return dict(SW=SW, off_win=off_win, off_bias=off_bias, off_fcw=off_fcw,
                off_fcw2=off_fcw2, off_fcb=off_fcb, rows=rows)


def _block_lane(stack, layer, H, L):
    """Lane offset of (stack, layer) in the fused state; top layers first so
    the final concat(sent_last, price_last) is simply state[:, :2H]."""
    return (2 * (L - 1 - layer) + stack) * H


def fold_bn(w, b, gamma, beta, mean, var, eps=BN_EPS):
    """Fold BatchNorm1d (eval, running stats) into the preceding Linear."""
    scale = gamma / jnp.sqrt(var + eps)
    return w * scale[None, :], (b - mean[None, :]) * scale[None, :] + beta[None, :]


def pack_params(sent_params, price_params, head_params, bn_stats, H, L, ds, dp, FC):
    """Build the single lane-dense parameter slab (done once at init)."""
    lay = slab_layout(H, L, ds, dp, FC)
    slab = jnp.zeros((lay["rows"], LANES), jnp.float32)

    # Block-structured transition matrix M (old-state row -> new-state col).
    for stack, params in enumerate((sent_params, price_params)):
        for l, (w_ih, w_hh, _) in enumerate(params):
            c = _block_lane(stack, l, H, L)
            slab = slab.at[c:c + H, c:c + H].set(w_hh)                # recurrent
            if l > 0:
                r = _block_lane(stack, l - 1, H, L)
                slab = slab.at[r:r + H, c:c + H].set(w_ih)            # layer l-1 -> l

    # Layer-0 input weights, positioned in their state lanes (one row / feature).
    cs = _block_lane(0, 0, H, L)
    cp = _block_lane(1, 0, H, L)
    slab = slab.at[lay["off_win"]:lay["off_win"] + ds, cs:cs + H].set(sent_params[0][0])
    slab = slab.at[lay["off_win"] + ds:lay["off_win"] + ds + dp,
                   cp:cp + H].set(price_params[0][0])

    # Per-layer bias rows (b_ih + b_hh folded), positioned for both stacks.
    for l in range(L):
        row = lay["off_bias"] + l
        c0 = _block_lane(0, l, H, L)
        c1 = _block_lane(1, l, H, L)
        slab = slab.at[row, c0:c0 + H].set(sent_params[l][2].reshape(H))
        slab = slab.at[row, c1:c1 + H].set(price_params[l][2].reshape(H))

    # FC head: BatchNorm1d (eval) folded into fc1..fc4; packed lane-dense in pairs.
    folded = []
    for k in range(4):
        w, b = head_params[k]
        gamma, beta, mean, var = bn_stats[k]
        folded.append(fold_bn(w, b, gamma, beta, mean, var))
    (w1, b1), (w2, b2), (w3, b3), (w4, b4) = folded
    w5, b5 = head_params[4]

    slab = slab.at[lay["off_fcw"]:lay["off_fcw"] + 2 * H, 0:FC].set(w1)
    slab = slab.at[lay["off_fcw"]:lay["off_fcw"] + FC, FC:2 * FC].set(w2)
    slab = slab.at[lay["off_fcw2"]:lay["off_fcw2"] + FC, 0:FC].set(w3)
    slab = slab.at[lay["off_fcw2"]:lay["off_fcw2"] + FC, FC:2 * FC].set(w4)
    slab = slab.at[lay["off_fcb"], 0:FC].set(b1.reshape(FC))
    slab = slab.at[lay["off_fcb"], FC:2 * FC].set(b2.reshape(FC))
    slab = slab.at[lay["off_fcb"] + 1, 0:FC].set(b3.reshape(FC))
    slab = slab.at[lay["off_fcb"] + 1, FC:2 * FC].set(b4.reshape(FC))
    slab = slab.at[lay["off_fcb"] + 2, 0:FC].set(w5.reshape(FC))
    slab = slab.at[lay["off_fcb"] + 2, FC].set(b5.reshape(()))
    return slab


# ----------------------------------------------------------------------------
# Fused forward kernel: wavefront recurrence (both stacks, all layers) + head.
# ----------------------------------------------------------------------------
def _make_kernel(*, T, B, ds, dp, H, L, FC, lay):
    NS = T + L - 1                                  # wavefront steps
    off_win, off_bias = lay["off_win"], lay["off_bias"]
    off_fcw, off_fcw2, off_fcb = lay["off_fcw"], lay["off_fcw2"], lay["off_fcb"]

    def kernel(s_ref, p_ref, slab_ref, out_ref):
        sent = s_ref[...]                           # (B, T*ds)
        price = p_ref[...]                          # (B, T*dp)

        # --- hoisted parameter loads (single slab, static slices; off the chain)
        m_bf = slab_ref[0:LANES, :].astype(jnp.bfloat16)     # (128,128) transition
        w_in = [slab_ref[off_win + k:off_win + k + 1, :] for k in range(ds + dp)]
        b_rows = [slab_ref[off_bias + l:off_bias + l + 1, :] for l in range(L)]

        # Distinct per-phase bias vectors, each traced/broadcast ONCE (hoisted).
        combos = {}

        def bias_for_step(s):
            key = (s < T, min(s, L - 1))
            if key not in combos:
                t = b_rows[0] if key[0] else None
                for j in range(1, key[1] + 1):
                    t = b_rows[j] if t is None else t + b_rows[j]
                if t is None:
                    t = jnp.zeros((1, LANES), jnp.float32)
                combos[key] = jnp.broadcast_to(t, (B, LANES))
            return combos[key]

        def input_term(s):
            # Layer-0 input projection for timestep s as VPU outer products that
            # land directly in the layer-0 state lanes (no MXU push, no concat).
            acc = sent[:, s * ds:s * ds + 1] * w_in[0]
            for k in range(1, ds):
                acc = acc + sent[:, s * ds + k:s * ds + k + 1] * w_in[k]
            for k in range(dp):
                acc = acc + price[:, s * dp + k:s * dp + k + 1] * w_in[ds + k]
            return acc

        # --- fused wavefront recurrence: layer l at step s computes h^(l)_{s-l}.
        # Step 0 starts from the all-zero state, so its matmul is skipped.
        h = jnp.tanh(bias_for_step(0) + input_term(0))       # (B, 128), f32
        for s in range(1, NS):
            a = bias_for_step(s)
            if s < T:
                a = a + input_term(s)
            h = jnp.tanh(a + jnp.dot(h.astype(jnp.bfloat16), m_bf,
                                     preferred_element_type=jnp.float32))
        # TODO(synk): nn.RNN inter-layer dropout is train-time only; identity here.

        # --- FC head (BatchNorm folded into fc1..fc4), f32.
        feat = h[:, 0:2 * H]                        # = cat(sent_last, price_last)
        blk12 = slab_ref[off_fcw:off_fcw + max(2 * H, FC), :]
        blk34 = slab_ref[off_fcw2:off_fcw2 + FC, :]
        brow12 = slab_ref[off_fcb:off_fcb + 1, :]
        brow34 = slab_ref[off_fcb + 1:off_fcb + 2, :]
        row5 = slab_ref[off_fcb + 2:off_fcb + 3, :]
        layers = (
            (blk12[0:2 * H, 0:FC], brow12[:, 0:FC]),           # fc1 (+bn1 folded)
            (blk12[0:FC, FC:2 * FC], brow12[:, FC:2 * FC]),    # fc2 (+bn2)
            (blk34[:, 0:FC], brow34[:, 0:FC]),                 # fc3 (+bn3)
            (blk34[:, FC:2 * FC], brow34[:, FC:2 * FC]),       # fc4 (+bn4)
        )
        x = feat
        for w_k, b_k in layers:
            # TODO(synk): F.dropout(p=0.3) is stochastic; identity at inference.
            x = jnp.maximum(
                jnp.dot(x, w_k, preferred_element_type=jnp.float32) + b_k, 0.0)
        # fc5 as multiply + lane reduction (weight stored as a (1,FC) row).
        out_ref[...] = (jnp.sum(x * row5[:, 0:FC], axis=1, keepdims=True)
                        + row5[:, FC:FC + 1])

    return kernel


def make_forward(*, T, B, ds, dp, H, L, FC):
    lay = slab_layout(H, L, ds, dp, FC)
    kernel = _make_kernel(T=T, B=B, ds=ds, dp=dp, H=H, L=L, FC=FC, lay=lay)
    NS = T + L - 1
    flops = (2 * (NS - 1) * B * LANES * LANES
             + 2 * B * (2 * H * FC + 3 * FC * FC + FC))
    bytes_accessed = 4 * (lay["rows"] * LANES + B * T * ds + B * T * dp + B)

    call = pl.pallas_call(
        kernel,
        out_shape=jax.ShapeDtypeStruct((B, 1), jnp.float32),
        in_specs=[pl.BlockSpec(memory_space=pltpu.MemorySpace.VMEM)] * 3,
        out_specs=pl.BlockSpec(memory_space=pltpu.MemorySpace.VMEM),
        cost_estimate=pl.CostEstimate(flops=flops,
                                      transcendentals=NS * B * LANES,
                                      bytes_accessed=bytes_accessed),
    )

    @jax.jit
    def forward(sentiment_seq, price_seq, slab):
        # Row-major views only (free / metadata-only); no standalone XLA
        # transpose or copy in front of the kernel.
        s2 = sentiment_seq.reshape(B, T * ds)
        p2 = price_seq.reshape(B, T * dp)
        return call(s2, p2, slab)

    return forward


# ----------------------------------------------------------------------------
# Pure-JAX reference (mirrors the PyTorch forward, inference mode).
# ----------------------------------------------------------------------------
def reference_forward(sentiment_seq, price_seq, sent_params, price_params,
                      head_params, bn_stats):
    x_s = sentiment_seq
    if x_s.ndim == 2:
        x_s = x_s[..., None]                        # unsqueeze(-1)

    def run_stack(x, params):
        Bb, Tt, _ = x.shape
        out = x
        for (w_ih, w_hh, b) in params:
            Hh = w_hh.shape[0]
            h = jnp.zeros((Bb, Hh), jnp.float32)
            ys = []
            for t in range(Tt):
                h = jnp.tanh(out[:, t, :] @ w_ih + h @ w_hh + b)
                ys.append(h)
            out = jnp.stack(ys, axis=1)
        return out[:, -1, :]

    x = jnp.concatenate([run_stack(x_s, sent_params),
                         run_stack(price_seq, price_params)], axis=1)
    for k in range(4):
        w, b = head_params[k]
        gamma, beta, mean, var = bn_stats[k]
        x = x @ w + b
        x = (x - mean) / jnp.sqrt(var + BN_EPS) * gamma + beta
        x = jnp.maximum(x, 0.0)                      # dropout = identity (inference)
    w5, b5 = head_params[4]
    return x @ w5 + b5


# ----------------------------------------------------------------------------
# Deterministic synthetic parameter init.
# ----------------------------------------------------------------------------
def init_rnn_params(key, in_dim, H, L):
    """Per-layer (W_ih:(Din,H), W_hh:(H,H), b:(1,H)=b_ih+b_hh) for a tanh RNN.
    Note: PyTorch stores (H, Din) and computes x @ W^T; transpose when loading
    a real checkpoint."""
    params = []
    for layer in range(L):
        d_in = in_dim if layer == 0 else H
        key, k1, k2, k3 = jax.random.split(key, 4)
        params.append((0.1 * jax.random.normal(k1, (d_in, H), jnp.float32),
                       0.1 * jax.random.normal(k2, (H, H), jnp.float32),
                       0.1 * jax.random.normal(k3, (1, H), jnp.float32)))
    return key, params


def init_head_params(key, in_dim, FC):
    dims = [(in_dim, FC), (FC, FC), (FC, FC), (FC, FC), (FC, 1)]
    head, bn = [], []
    for i, (di, do) in enumerate(dims):
        key, kw, kb = jax.random.split(key, 3)
        head.append((0.1 * jax.random.normal(kw, (di, do), jnp.float32),
                     0.1 * jax.random.normal(kb, (1, do), jnp.float32)))
        if i < 4:
            # Fresh BatchNorm1d eval stats; fold_bn handles arbitrary trained stats.
            bn.append((jnp.ones((do,), jnp.float32), jnp.zeros((do,), jnp.float32),
                       jnp.zeros((do,), jnp.float32), jnp.ones((do,), jnp.float32)))
    return key, head, bn


if __name__ == "__main__":
    # cfg: hidden_size=16, hidden_layers=0, fc_size=32, dropout=0.3
    B, T = 2, 8
    H = 16 * 2            # hidden_size * 2 = 32
    L = 0 + 2             # hidden_layers + 2 = 2
    FC = 32 * 2           # fc_size * 2 = 64
    input_size = (1, 4)   # (sentiment features, price features)
    ds, dp = input_size

    key = jax.random.PRNGKey(0)
    key, ks, kp = jax.random.split(key, 3)
    sentiment_seq = jax.random.normal(ks, (B, T), jnp.float32)    # unsqueezed in-model
    price_seq = jax.random.normal(kp, (B, T, dp), jnp.float32)

    key, sent_params = init_rnn_params(key, ds, H, L)
    key, price_params = init_rnn_params(key, dp, H, L)
    key, head_params, bn_stats = init_head_params(key, 2 * H, FC)

    slab = pack_params(sent_params, price_params, head_params, bn_stats,
                       H, L, ds, dp, FC)
    forward = make_forward(T=T, B=B, ds=ds, dp=dp, H=H, L=L, FC=FC)

    out = jax.block_until_ready(forward(sentiment_seq, price_seq, slab))
    assert out.shape == (B, 1) and bool(jnp.all(jnp.isfinite(out)))

    # Validate against the pure-JAX f32 reference.  Tolerance is loose only
    # because the recurrence matmul uses bf16 operands; structural errors
    # would show up as O(1) mismatches.
    ref = jax.jit(reference_forward)(sentiment_seq, price_seq, sent_params,
                                     price_params, head_params, bn_stats)
    assert bool(jnp.allclose(out, ref, atol=5e-2, rtol=5e-2)), (out, ref)

    print("KERNEL_OK")
</pallas_src>

<mosaic_0001>
module attributes {stable_mosaic.version = 11 : i64} {
  func.func @kernel(%arg0: memref<2x8xf32, #tpu.memory_space<vmem>>, %arg1: memref<2x32xf32, #tpu.memory_space<vmem>>, %arg2: memref<272x128xf32, #tpu.memory_space<vmem>>, %arg3: memref<2x1xf32, #tpu.memory_space<vmem>>) attributes {dimension_semantics = [], scalar_prefetch = 0 : i64, scratch_operands = 0 : i64, tpu.core_type = #tpu.core_type<tc>} {
    %c0 = arith.constant 0 : index
    %c0_0 = arith.constant 0 : index
    %0 = vector.load %arg0[%c0, %c0_0] : memref<2x8xf32, #tpu.memory_space<vmem>>, vector<2x8xf32>
    %c0_1 = arith.constant 0 : index
    %c0_2 = arith.constant 0 : index
    %1 = vector.load %arg1[%c0_1, %c0_2] : memref<2x32xf32, #tpu.memory_space<vmem>>, vector<2x32xf32>
    %c0_3 = arith.constant 0 : index
    %c0_4 = arith.constant 0 : index
    %2 = vector.load %arg2[%c0_3, %c0_4] : memref<272x128xf32, #tpu.memory_space<vmem>>, vector<128x128xf32>
    %3 = arith.truncf %2 : vector<128x128xf32> to vector<128x128xbf16>
    %c128 = arith.constant 128 : index
    %c0_5 = arith.constant 0 : index
    %4 = vector.load %arg2[%c128, %c0_5] : memref<272x128xf32, #tpu.memory_space<vmem>>, vector<1x128xf32>
    %c129 = arith.constant 129 : index
    %c0_6 = arith.constant 0 : index
    %5 = vector.load %arg2[%c129, %c0_6] : memref<272x128xf32, #tpu.memory_space<vmem>>, vector<1x128xf32>
    %c130 = arith.constant 130 : index
    %c0_7 = arith.constant 0 : index
    %6 = vector.load %arg2[%c130, %c0_7] : memref<272x128xf32, #tpu.memory_space<vmem>>, vector<1x128xf32>
    %c131 = arith.constant 131 : index
    %c0_8 = arith.constant 0 : index
    %7 = vector.load %arg2[%c131, %c0_8] : memref<272x128xf32, #tpu.memory_space<vmem>>, vector<1x128xf32>
    %c132 = arith.constant 132 : index
    %c0_9 = arith.constant 0 : index
    %8 = vector.load %arg2[%c132, %c0_9] : memref<272x128xf32, #tpu.memory_space<vmem>>, vector<1x128xf32>
    %c133 = arith.constant 133 : index
    %c0_10 = arith.constant 0 : index
    %9 = vector.load %arg2[%c133, %c0_10] : memref<272x128xf32, #tpu.memory_space<vmem>>, vector<1x128xf32>
    %c134 = arith.constant 134 : index
    %c0_11 = arith.constant 0 : index
    %10 = vector.load %arg2[%c134, %c0_11] : memref<272x128xf32, #tpu.memory_space<vmem>>, vector<1x128xf32>
    %11 = vector.shape_cast %9 : vector<1x128xf32> to vector<1x128xf32>
    %12 = vector.broadcast %11 : vector<1x128xf32> to vector<2x128xf32>
    %13 = vector.extract_strided_slice %0 {offsets = [0, 0], sizes = [2, 1], strides = [1, 1]} : vector<2x8xf32> to vector<2x1xf32>
    %14 = vector.broadcast %13 : vector<2x1xf32> to vector<2x128xf32>
    %15 = vector.broadcast %4 : vector<1x128xf32> to vector<2x128xf32>
    %16 = arith.mulf %14, %15 : vector<2x128xf32>
    %17 = vector.extract_strided_slice %1 {offsets = [0, 0], sizes = [2, 1], strides = [1, 1]} : vector<2x32xf32> to vector<2x1xf32>
    %18 = vector.broadcast %17 : vector<2x1xf32> to vector<2x128xf32>
    %19 = vector.broadcast %5 : vector<1x128xf32> to vector<2x128xf32>
    %20 = arith.mulf %18, %19 : vector<2x128xf32>
    %21 = arith.addf %16, %20 : vector<2x128xf32>
    %22 = vector.extract_strided_slice %1 {offsets = [0, 1], sizes = [2, 1], strides = [1, 1]} : vector<2x32xf32> to vector<2x1xf32>
    %23 = vector.broadcast %22 : vector<2x1xf32> to vector<2x128xf32>
    %24 = vector.broadcast %6 : vector<1x128xf32> to vector<2x128xf32>
    %25 = arith.mulf %23, %24 : vector<2x128xf32>
    %26 = arith.addf %21, %25 : vector<2x128xf32>
    %27 = vector.extract_strided_slice %1 {offsets = [0, 2], sizes = [2, 1], strides = [1, 1]} : vector<2x32xf32> to vector<2x1xf32>
    %28 = vector.broadcast %27 : vector<2x1xf32> to vector<2x128xf32>
    %29 = vector.broadcast %7 : vector<1x128xf32> to vector<2x128xf32>
    %30 = arith.mulf %28, %29 : vector<2x128xf32>
    %31 = arith.addf %26, %30 : vector<2x128xf32>
    %32 = vector.extract_strided_slice %1 {offsets = [0, 3], sizes = [2, 1], strides = [1, 1]} : vector<2x32xf32> to vector<2x1xf32>
    %33 = vector.broadcast %32 : vector<2x1xf32> to vector<2x128xf32>
    %34 = vector.broadcast %8 : vector<1x128xf32> to vector<2x128xf32>
    %35 = arith.mulf %33, %34 : vector<2x128xf32>
    %36 = arith.addf %31, %35 : vector<2x128xf32>
    %37 = arith.addf %12, %36 : vector<2x128xf32>
    %38 = math.tanh %37 : vector<2x128xf32>
    %39 = arith.addf %9, %10 : vector<1x128xf32>
    %40 = vector.shape_cast %39 : vector<1x128xf32> to vector<1x128xf32>
    %41 = vector.broadcast %40 : vector<1x128xf32> to vector<2x128xf32>
    %42 = vector.extract_strided_slice %0 {offsets = [0, 1], sizes = [2, 1], strides = [1, 1]} : vector<2x8xf32> to vector<2x1xf32>
    %43 = vector.broadcast %42 : vector<2x1xf32> to vector<2x128xf32>
    %44 = vector.broadcast %4 : vector<1x128xf32> to vector<2x128xf32>
    %45 = arith.mulf %43, %44 : vector<2x128xf32>
    %46 = vector.extract_strided_slice %1 {offsets = [0, 4], sizes = [2, 1], strides = [1, 1]} : vector<2x32xf32> to vector<2x1xf32>
    %47 = vector.broadcast %46 : vector<2x1xf32> to vector<2x128xf32>
    %48 = vector.broadcast %5 : vector<1x128xf32> to vector<2x128xf32>
    %49 = arith.mulf %47, %48 : vector<2x128xf32>
    %50 = arith.addf %45, %49 : vector<2x128xf32>
    %51 = vector.extract_strided_slice %1 {offsets = [0, 5], sizes = [2, 1], strides = [1, 1]} : vector<2x32xf32> to vector<2x1xf32>
    %52 = vector.broadcast %51 : vector<2x1xf32> to vector<2x128xf32>
    %53 = vector.broadcast %6 : vector<1x128xf32> to vector<2x128xf32>
    %54 = arith.mulf %52, %53 : vector<2x128xf32>
    %55 = arith.addf %50, %54 : vector<2x128xf32>
    %56 = vector.extract_strided_slice %1 {offsets = [0, 6], sizes = [2, 1], strides = [1, 1]} : vector<2x32xf32> to vector<2x1xf32>
    %57 = vector.broadcast %56 : vector<2x1xf32> to vector<2x128xf32>
    %58 = vector.broadcast %7 : vector<1x128xf32> to vector<2x128xf32>
    %59 = arith.mulf %57, %58 : vector<2x128xf32>
    %60 = arith.addf %55, %59 : vector<2x128xf32>
    %61 = vector.extract_strided_slice %1 {offsets = [0, 7], sizes = [2, 1], strides = [1, 1]} : vector<2x32xf32> to vector<2x1xf32>
    %62 = vector.broadcast %61 : vector<2x1xf32> to vector<2x128xf32>
    %63 = vector.broadcast %8 : vector<1x128xf32> to vector<2x128xf32>
    %64 = arith.mulf %62, %63 : vector<2x128xf32>
    %65 = arith.addf %60, %64 : vector<2x128xf32>
    %66 = arith.addf %41, %65 : vector<2x128xf32>
    %67 = arith.truncf %38 : vector<2x128xf32> to vector<2x128xbf16>
    %cst = arith.constant dense<0.000000e+00> : vector<2x128xf32>
    %68 = tpu.matmul %67, %3, %cst {dimension_numbers = #tpu.dot_dimension_numbers<[1], [0], [0], [1], [0, 0, 1, 1], [], []>} : vector<2x128xbf16>, vector<128x128xbf16>, vector<2x128xf32> -> vector<2x128xf32>
    %69 = arith.addf %66, %68 : vector<2x128xf32>
    %70 = math.tanh %69 : vector<2x128xf32>
    %71 = vector.extract_strided_slice %0 {offsets = [0, 2], sizes = [2, 1], strides = [1, 1]} : vector<2x8xf32> to vector<2x1xf32>
    %72 = vector.broadcast %71 : vector<2x1xf32> to vector<2x128xf32>
    %73 = vector.broadcast %4 : vector<1x128xf32> to vector<2x128xf32>
    %74 = arith.mulf %72, %73 : vector<2x128xf32>
    %75 = vector.extract_strided_slice %1 {offsets = [0, 8], sizes = [2, 1], strides = [1, 1]} : vector<2x32xf32> to vector<2x1xf32>
    %76 = vector.broadcast %75 : vector<2x1xf32> to vector<2x128xf32>
    %77 = vector.broadcast %5 : vector<1x128xf32> to vector<2x128xf32>
    %78 = arith.mulf %76, %77 : vector<2x128xf32>
    %79 = arith.addf %74, %78 : vector<2x128xf32>
    %80 = vector.extract_strided_slice %1 {offsets = [0, 9], sizes = [2, 1], strides = [1, 1]} : vector<2x32xf32> to vector<2x1xf32>
    %81 = vector.broadcast %80 : vector<2x1xf32> to vector<2x128xf32>
    %82 = vector.broadcast %6 : vector<1x128xf32> to vector<2x128xf32>
    %83 = arith.mulf %81, %82 : vector<2x128xf32>
    %84 = arith.addf %79, %83 : vector<2x128xf32>
    %85 = vector.extract_strided_slice %1 {offsets = [0, 10], sizes = [2, 1], strides = [1, 1]} : vector<2x32xf32> to vector<2x1xf32>
    %86 = vector.broadcast %85 : vector<2x1xf32> to vector<2x128xf32>
    %87 = vector.broadcast %7 : vector<1x128xf32> to vector<2x128xf32>
    %88 = arith.mulf %86, %87 : vector<2x128xf32>
    %89 = arith.addf %84, %88 : vector<2x128xf32>
    %90 = vector.extract_strided_slice %1 {offsets = [0, 11], sizes = [2, 1], strides = [1, 1]} : vector<2x32xf32> to vector<2x1xf32>
    %91 = vector.broadcast %90 : vector<2x1xf32> to vector<2x128xf32>
    %92 = vector.broadcast %8 : vector<1x128xf32> to vector<2x128xf32>
    %93 = arith.mulf %91, %92 : vector<2x128xf32>
    %94 = arith.addf %89, %93 : vector<2x128xf32>
    %95 = arith.addf %41, %94 : vector<2x128xf32>
    %96 = arith.truncf %70 : vector<2x128xf32> to vector<2x128xbf16>
    %cst_12 = arith.constant dense<0.000000e+00> : vector<2x128xf32>
    %97 = tpu.matmul %96, %3, %cst_12 {dimension_numbers = #tpu.dot_dimension_numbers<[1], [0], [0], [1], [0, 0, 1, 1], [], []>} : vector<2x128xbf16>, vector<128x128xbf16>, vector<2x128xf32> -> vector<2x128xf32>
    %98 = arith.addf %95, %97 : vector<2x128xf32>
    %99 = math.tanh %98 : vector<2x128xf32>
    %100 = vector.extract_strided_slice %0 {offsets = [0, 3], sizes = [2, 1], strides = [1, 1]} : vector<2x8xf32> to vector<2x1xf32>
    %101 = vector.broadcast %100 : vector<2x1xf32> to vector<2x128xf32>
    %102 = vector.broadcast %4 : vector<1x128xf32> to vector<2x128xf32>
    %103 = arith.mulf %101, %102 : vector<2x128xf32>
    %104 = vector.extract_strided_slice %1 {offsets = [0, 12], sizes = [2, 1], strides = [1, 1]} : vector<2x32xf32> to vector<2x1xf32>
    %105 = vector.broadcast %104 : vector<2x1xf32> to vector<2x128xf32>
    %106 = vector.broadcast %5 : vector<1x128xf32> to vector<2x128xf32>
    %107 = arith.mulf %105, %106 : vector<2x128xf32>
    %108 = arith.addf %103, %107 : vector<2x128xf32>
    %109 = vector.extract_strided_slice %1 {offsets = [0, 13], sizes = [2, 1], strides = [1, 1]} : vector<2x32xf32> to vector<2x1xf32>
    %110 = vector.broadcast %109 : vector<2x1xf32> to vector<2x128xf32>
    %111 = vector.broadcast %6 : vector<1x128xf32> to vector<2x128xf32>
    %112 = arith.mulf %110, %111 : vector<2x128xf32>
    %113 = arith.addf %108, %112 : vector<2x128xf32>
    %114 = vector.extract_strided_slice %1 {offsets = [0, 14], sizes = [2, 1], strides = [1, 1]} : vector<2x32xf32> to vector<2x1xf32>
    %115 = vector.broadcast %114 : vector<2x1xf32> to vector<2x128xf32>
    %116 = vector.broadcast %7 : vector<1x128xf32> to vector<2x128xf32>
    %117 = arith.mulf %115, %116 : vector<2x128xf32>
    %118 = arith.addf %113, %117 : vector<2x128xf32>
    %119 = vector.extract_strided_slice %1 {offsets = [0, 15], sizes = [2, 1], strides = [1, 1]} : vector<2x32xf32> to vector<2x1xf32>
    %120 = vector.broadcast %119 : vector<2x1xf32> to vector<2x128xf32>
    %121 = vector.broadcast %8 : vector<1x128xf32> to vector<2x128xf32>
    %122 = arith.mulf %120, %121 : vector<2x128xf32>
    %123 = arith.addf %118, %122 : vector<2x128xf32>
    %124 = arith.addf %41, %123 : vector<2x128xf32>
    %125 = arith.truncf %99 : vector<2x128xf32> to vector<2x128xbf16>
    %cst_13 = arith.constant dense<0.000000e+00> : vector<2x128xf32>
    %126 = tpu.matmul %125, %3, %cst_13 {dimension_numbers = #tpu.dot_dimension_numbers<[1], [0], [0], [1], [0, 0, 1, 1], [], []>} : vector<2x128xbf16>, vector<128x128xbf16>, vector<2x128xf32> -> vector<2x128xf32>
    %127 = arith.addf %124, %126 : vector<2x128xf32>
    %128 = math.tanh %127 : vector<2x128xf32>
    %129 = vector.extract_strided_slice %0 {offsets = [0, 4], sizes = [2, 1], strides = [1, 1]} : vector<2x8xf32> to vector<2x1xf32>
    %130 = vector.broadcast %129 : vector<2x1xf32> to vector<2x128xf32>
    %131 = vector.broadcast %4 : vector<1x128xf32> to vector<2x128xf32>
    %132 = arith.mulf %130, %131 : vector<2x128xf32>
    %133 = vector.extract_strided_slice %1 {offsets = [0, 16], sizes = [2, 1], strides = [1, 1]} : vector<2x32xf32> to vector<2x1xf32>
    %134 = vector.broadcast %133 : vector<2x1xf32> to vector<2x128xf32>
    %135 = vector.broadcast %5 : vector<1x128xf32> to vector<2x128xf32>
    %136 = arith.mulf %134, %135 : vector<2x128xf32>
    %137 = arith.addf %132, %136 : vector<2x128xf32>
    %138 = vector.extract_strided_slice %1 {offsets = [0, 17], sizes = [2, 1], strides = [1, 1]} : vector<2x32xf32> to vector<2x1xf32>
    %139 = vector.broadcast %138 : vector<2x1xf32> to vector<2x128xf32>
    %140 = vector.broadcast %6 : vector<1x128xf32> to vector<2x128xf32>
    %141 = arith.mulf %139, %140 : vector<2x128xf32>
    %142 = arith.addf %137, %141 : vector<2x128xf32>
    %143 = vector.extract_strided_slice %1 {offsets = [0, 18], sizes = [2, 1], strides = [1, 1]} : vector<2x32xf32> to vector<2x1xf32>
    %144 = vector.broadcast %143 : vector<2x1xf32> to vector<2x128xf32>
    %145 = vector.broadcast %7 : vector<1x128xf32> to vector<2x128xf32>
    %146 = arith.mulf %144, %145 : vector<2x128xf32>
    %147 = arith.addf %142, %146 : vector<2x128xf32>
    %148 = vector.extract_strided_slice %1 {offsets = [0, 19], sizes = [2, 1], strides = [1, 1]} : vector<2x32xf32> to vector<2x1xf32>
    %149 = vector.broadcast %148 : vector<2x1xf32> to vector<2x128xf32>
    %150 = vector.broadcast %8 : vector<1x128xf32> to vector<2x128xf32>
    %151 = arith.mulf %149, %150 : vector<2x128xf32>
    %152 = arith.addf %147, %151 : vector<2x128xf32>
    %153 = arith.addf %41, %152 : vector<2x128xf32>
    %154 = arith.truncf %128 : vector<2x128xf32> to vector<2x128xbf16>
    %cst_14 = arith.constant dense<0.000000e+00> : vector<2x128xf32>
    %155 = tpu.matmul %154, %3, %cst_14 {dimension_numbers = #tpu.dot_dimension_numbers<[1], [0], [0], [1], [0, 0, 1, 1], [], []>} : vector<2x128xbf16>, vector<128x128xbf16>, vector<2x128xf32> -> vector<2x128xf32>
    %156 = arith.addf %153, %155 : vector<2x128xf32>
    %157 = math.tanh %156 : vector<2x128xf32>
    %158 = vector.extract_strided_slice %0 {offsets = [0, 5], sizes = [2, 1], strides = [1, 1]} : vector<2x8xf32> to vector<2x1xf32>
    %159 = vector.broadcast %158 : vector<2x1xf32> to vector<2x128xf32>
    %160 = vector.broadcast %4 : vector<1x128xf32> to vector<2x128xf32>
    %161 = arith.mulf %159, %160 : vector<2x128xf32>
    %162 = vector.extract_strided_slice %1 {offsets = [0, 20], sizes = [2, 1], strides = [1, 1]} : vector<2x32xf32> to vector<2x1xf32>
    %163 = vector.broadcast %162 : vector<2x1xf32> to vector<2x128xf32>
    %164 = vector.broadcast %5 : vector<1x128xf32> to vector<2x128xf32>
    %165 = arith.mulf %163, %164 : vector<2x128xf32>
    %166 = arith.addf %161, %165 : vector<2x128xf32>
    %167 = vector.extract_strided_slice %1 {offsets = [0, 21], sizes = [2, 1], strides = [1, 1]} : vector<2x32xf32> to vector<2x1xf32>
    %168 = vector.broadcast %167 : vector<2x1xf32> to vector<2x128xf32>
    %169 = vector.broadcast %6 : vector<1x128xf32> to vector<2x128xf32>
    %170 = arith.mulf %168, %169 : vector<2x128xf32>
    %171 = arith.addf %166, %170 : vector<2x128xf32>
    %172 = vector.extract_strided_slice %1 {offsets = [0, 22], sizes = [2, 1], strides = [1, 1]} : vector<2x32xf32> to vector<2x1xf32>
    %173 = vector.broadcast %172 : vector<2x1xf32> to vector<2x128xf32>
    %174 = vector.broadcast %7 : vector<1x128xf32> to vector<2x128xf32>
    %175 = arith.mulf %173, %174 : vector<2x128xf32>
    %176 = arith.addf %171, %175 : vector<2x128xf32>
    %177 = vector.extract_strided_slice %1 {offsets = [0, 23], sizes = [2, 1], strides = [1, 1]} : vector<2x32xf32> to vector<2x1xf32>
    %178 = vector.broadcast %177 : vector<2x1xf32> to vector<2x128xf32>
    %179 = vector.broadcast %8 : vector<1x128xf32> to vector<2x128xf32>
    %180 = arith.mulf %178, %179 : vector<2x128xf32>
    %181 = arith.addf %176, %180 : vector<2x128xf32>
    %182 = arith.addf %41, %181 : vector<2x128xf32>
    %183 = arith.truncf %157 : vector<2x128xf32> to vector<2x128xbf16>
    %cst_15 = arith.constant dense<0.000000e+00> : vector<2x128xf32>
    %184 = tpu.matmul %183, %3, %cst_15 {dimension_numbers = #tpu.dot_dimension_numbers<[1], [0], [0], [1], [0, 0, 1, 1], [], []>} : vector<2x128xbf16>, vector<128x128xbf16>, vector<2x128xf32> -> vector<2x128xf32>
    %185 = arith.addf %182, %184 : vector<2x128xf32>
    %186 = math.tanh %185 : vector<2x128xf32>
    %187 = vector.extract_strided_slice %0 {offsets = [0, 6], sizes = [2, 1], strides = [1, 1]} : vector<2x8xf32> to vector<2x1xf32>
    %188 = vector.broadcast %187 : vector<2x1xf32> to vector<2x128xf32>
    %189 = vector.broadcast %4 : vector<1x128xf32> to vector<2x128xf32>
    %190 = arith.mulf %188, %189 : vector<2x128xf32>
    %191 = vector.extract_strided_slice %1 {offsets = [0, 24], sizes = [2, 1], strides = [1, 1]} : vector<2x32xf32> to vector<2x1xf32>
    %192 = vector.broadcast %191 : vector<2x1xf32> to vector<2x128xf32>
    %193 = vector.broadcast %5 : vector<1x128xf32> to vector<2x128xf32>
    %194 = arith.mulf %192, %193 : vector<2x128xf32>
    %195 = arith.addf %190, %194 : vector<2x128xf32>
    %196 = vector.extract_strided_slice %1 {offsets = [0, 25], sizes = [2, 1], strides = [1, 1]} : vector<2x32xf32> to vector<2x1xf32>
    %197 = vector.broadcast %196 : vector<2x1xf32> to vector<2x128xf32>
    %198 = vector.broadcast %6 : vector<1x128xf32> to vector<2x128xf32>
    %199 = arith.mulf %197, %198 : vector<2x128xf32>
    %200 = arith.addf %195, %199 : vector<2x128xf32>
    %201 = vector.extract_strided_slice %1 {offsets = [0, 26], sizes = [2, 1], strides = [1, 1]} : vector<2x32xf32> to vector<2x1xf32>
    %202 = vector.broadcast %201 : vector<2x1xf32> to vector<2x128xf32>
    %203 = vector.broadcast %7 : vector<1x128xf32> to vector<2x128xf32>
    %204 = arith.mulf %202, %203 : vector<2x128xf32>
    %205 = arith.addf %200, %204 : vector<2x128xf32>
    %206 = vector.extract_strided_slice %1 {offsets = [0, 27], sizes = [2, 1], strides = [1, 1]} : vector<2x32xf32> to vector<2x1xf32>
    %207 = vector.broadcast %206 : vector<2x1xf32> to vector<2x128xf32>
    %208 = vector.broadcast %8 : vector<1x128xf32> to vector<2x128xf32>
    %209 = arith.mulf %207, %208 : vector<2x128xf32>
    %210 = arith.addf %205, %209 : vector<2x128xf32>
    %211 = arith.addf %41, %210 : vector<2x128xf32>
    %212 = arith.truncf %186 : vector<2x128xf32> to vector<2x128xbf16>
    %cst_16 = arith.constant dense<0.000000e+00> : vector<2x128xf32>
    %213 = tpu.matmul %212, %3, %cst_16 {dimension_numbers = #tpu.dot_dimension_numbers<[1], [0], [0], [1], [0, 0, 1, 1], [], []>} : vector<2x128xbf16>, vector<128x128xbf16>, vector<2x128xf32> -> vector<2x128xf32>
    %214 = arith.addf %211, %213 : vector<2x128xf32>
    %215 = math.tanh %214 : vector<2x128xf32>
    %216 = vector.extract_strided_slice %0 {offsets = [0, 7], sizes = [2, 1], strides = [1, 1]} : vector<2x8xf32> to vector<2x1xf32>
    %217 = vector.broadcast %216 : vector<2x1xf32> to vector<2x128xf32>
    %218 = vector.broadcast %4 : vector<1x128xf32> to vector<2x128xf32>
    %219 = arith.mulf %217, %218 : vector<2x128xf32>
    %220 = vector.extract_strided_slice %1 {offsets = [0, 28], sizes = [2, 1], strides = [1, 1]} : vector<2x32xf32> to vector<2x1xf32>
    %221 = vector.broadcast %220 : vector<2x1xf32> to vector<2x128xf32>
    %222 = vector.broadcast %5 : vector<1x128xf32> to vector<2x128xf32>
    %223 = arith.mulf %221, %222 : vector<2x128xf32>
    %224 = arith.addf %219, %223 : vector<2x128xf32>
    %225 = vector.extract_strided_slice %1 {offsets = [0, 29], sizes = [2, 1], strides = [1, 1]} : vector<2x32xf32> to vector<2x1xf32>
    %226 = vector.broadcast %225 : vector<2x1xf32> to vector<2x128xf32>
    %227 = vector.broadcast %6 : vector<1x128xf32> to vector<2x128xf32>
    %228 = arith.mulf %226, %227 : vector<2x128xf32>
    %229 = arith.addf %224, %228 : vector<2x128xf32>
    %230 = vector.extract_strided_slice %1 {offsets = [0, 30], sizes = [2, 1], strides = [1, 1]} : vector<2x32xf32> to vector<2x1xf32>
    %231 = vector.broadcast %230 : vector<2x1xf32> to vector<2x128xf32>
    %232 = vector.broadcast %7 : vector<1x128xf32> to vector<2x128xf32>
    %233 = arith.mulf %231, %232 : vector<2x128xf32>
    %234 = arith.addf %229, %233 : vector<2x128xf32>
    %235 = vector.extract_strided_slice %1 {offsets = [0, 31], sizes = [2, 1], strides = [1, 1]} : vector<2x32xf32> to vector<2x1xf32>
    %236 = vector.broadcast %235 : vector<2x1xf32> to vector<2x128xf32>
    %237 = vector.broadcast %8 : vector<1x128xf32> to vector<2x128xf32>
    %238 = arith.mulf %236, %237 : vector<2x128xf32>
    %239 = arith.addf %234, %238 : vector<2x128xf32>
    %240 = arith.addf %41, %239 : vector<2x128xf32>
    %241 = arith.truncf %215 : vector<2x128xf32> to vector<2x128xbf16>
    %cst_17 = arith.constant dense<0.000000e+00> : vector<2x128xf32>
    %242 = tpu.matmul %241, %3, %cst_17 {dimension_numbers = #tpu.dot_dimension_numbers<[1], [0], [0], [1], [0, 0, 1, 1], [], []>} : vector<2x128xbf16>, vector<128x128xbf16>, vector<2x128xf32> -> vector<2x128xf32>
    %243 = arith.addf %240, %242 : vector<2x128xf32>
    %244 = math.tanh %243 : vector<2x128xf32>
    %245 = vector.shape_cast %10 : vector<1x128xf32> to vector<1x128xf32>
    %246 = vector.broadcast %245 : vector<1x128xf32> to vector<2x128xf32>
    %247 = arith.truncf %244 : vector<2x128xf32> to vector<2x128xbf16>
    %cst_18 = arith.constant dense<0.000000e+00> : vector<2x128xf32>
    %248 = tpu.matmul %247, %3, %cst_18 {dimension_numbers = #tpu.dot_dimension_numbers<[1], [0], [0], [1], [0, 0, 1, 1], [], []>} : vector<2x128xbf16>, vector<128x128xbf16>, vector<2x128xf32> -> vector<2x128xf32>
    %249 = arith.addf %246, %248 : vector<2x128xf32>
    %250 = math.tanh %249 : vector<2x128xf32>
    %251 = vector.extract_strided_slice %250 {offsets = [0, 0], sizes = [2, 64], strides = [1, 1]} : vector<2x128xf32> to vector<2x64xf32>
    %c136 = arith.constant 136 : index
    %c0_19 = arith.constant 0 : index
    %252 = vector.load %arg2[%c136, %c0_19] : memref<272x128xf32, #tpu.memory_space<vmem>>, vector<64x128xf32>
    %c200 = arith.constant 200 : index
    %c0_20 = arith.constant 0 : index
    %253 = vector.load %arg2[%c200, %c0_20] : memref<272x128xf32, #tpu.memory_space<vmem>>, vector<64x128xf32>
    %c264 = arith.constant 264 : index
    %c0_21 = arith.constant 0 : index
    %254 = vector.load %arg2[%c264, %c0_21] : memref<272x128xf32, #tpu.memory_space<vmem>>, vector<1x128xf32>
    %c265 = arith.constant 265 : index
    %c0_22 = arith.constant 0 : index
    %255 = vector.load %arg2[%c265, %c0_22] : memref<272x128xf32, #tpu.memory_space<vmem>>, vector<1x128xf32>
    %c266 = arith.constant 266 : index
    %c0_23 = arith.constant 0 : index
    %256 = vector.load %arg2[%c266, %c0_23] : memref<272x128xf32, #tpu.memory_space<vmem>>, vector<1x128xf32>
    %257 = vector.extract_strided_slice %252 {offsets = [0, 0], sizes = [64, 64], strides = [1, 1]} : vector<64x128xf32> to vector<64x64xf32>
    %258 = vector.extract_strided_slice %254 {offsets = [0, 0], sizes = [1, 64], strides = [1, 1]} : vector<1x128xf32> to vector<1x64xf32>
    %259 = vector.extract_strided_slice %252 {offsets = [0, 64], sizes = [64, 64], strides = [1, 1]} : vector<64x128xf32> to vector<64x64xf32>
    %260 = vector.extract_strided_slice %254 {offsets = [0, 64], sizes = [1, 64], strides = [1, 1]} : vector<1x128xf32> to vector<1x64xf32>
    %261 = vector.extract_strided_slice %253 {offsets = [0, 0], sizes = [64, 64], strides = [1, 1]} : vector<64x128xf32> to vector<64x64xf32>
    %262 = vector.extract_strided_slice %255 {offsets = [0, 0], sizes = [1, 64], strides = [1, 1]} : vector<1x128xf32> to vector<1x64xf32>
    %263 = vector.extract_strided_slice %253 {offsets = [0, 64], sizes = [64, 64], strides = [1, 1]} : vector<64x128xf32> to vector<64x64xf32>
    %264 = vector.extract_strided_slice %255 {offsets = [0, 64], sizes = [1, 64], strides = [1, 1]} : vector<1x128xf32> to vector<1x64xf32>
    %cst_24 = arith.constant dense<0.000000e+00> : vector<2x64xf32>
    %265 = tpu.matmul %251, %257, %cst_24 {dimension_numbers = #tpu.dot_dimension_numbers<[1], [0], [0], [1], [0, 0, 1, 1], [], []>} : vector<2x64xf32>, vector<64x64xf32>, vector<2x64xf32> -> vector<2x64xf32>
    %266 = vector.broadcast %258 : vector<1x64xf32> to vector<2x64xf32>
    %267 = arith.addf %265, %266 : vector<2x64xf32>
    %cst_25 = arith.constant 0.000000e+00 : f32
    %268 = vector.broadcast %cst_25 : f32 to vector<2x64xf32>
    %269 = arith.maximumf %267, %268 : vector<2x64xf32>
    %cst_26 = arith.constant dense<0.000000e+00> : vector<2x64xf32>
    %270 = tpu.matmul %269, %259, %cst_26 {dimension_numbers = #tpu.dot_dimension_numbers<[1], [0], [0], [1], [0, 0, 1, 1], [], []>} : vector<2x64xf32>, vector<64x64xf32>, vector<2x64xf32> -> vector<2x64xf32>
    %271 = vector.broadcast %260 : vector<1x64xf32> to vector<2x64xf32>
    %272 = arith.addf %270, %271 : vector<2x64xf32>
    %cst_27 = arith.constant 0.000000e+00 : f32
    %273 = vector.broadcast %cst_27 : f32 to vector<2x64xf32>
    %274 = arith.maximumf %272, %273 : vector<2x64xf32>
    %cst_28 = arith.constant dense<0.000000e+00> : vector<2x64xf32>
    %275 = tpu.matmul %274, %261, %cst_28 {dimension_numbers = #tpu.dot_dimension_numbers<[1], [0], [0], [1], [0, 0, 1, 1], [], []>} : vector<2x64xf32>, vector<64x64xf32>, vector<2x64xf32> -> vector<2x64xf32>
    %276 = vector.broadcast %262 : vector<1x64xf32> to vector<2x64xf32>
    %277 = arith.addf %275, %276 : vector<2x64xf32>
    %cst_29 = arith.constant 0.000000e+00 : f32
    %278 = vector.broadcast %cst_29 : f32 to vector<2x64xf32>
    %279 = arith.maximumf %277, %278 : vector<2x64xf32>
    %cst_30 = arith.constant dense<0.000000e+00> : vector<2x64xf32>
    %280 = tpu.matmul %279, %263, %cst_30 {dimension_numbers = #tpu.dot_dimension_numbers<[1], [0], [0], [1], [0, 0, 1, 1], [], []>} : vector<2x64xf32>, vector<64x64xf32>, vector<2x64xf32> -> vector<2x64xf32>
    %281 = vector.broadcast %264 : vector<1x64xf32> to vector<2x64xf32>
    %282 = arith.addf %280, %281 : vector<2x64xf32>
    %cst_31 = arith.constant 0.000000e+00 : f32
    %283 = vector.broadcast %cst_31 : f32 to vector<2x64xf32>
    %284 = arith.maximumf %282, %283 : vector<2x64xf32>
    %285 = vector.extract_strided_slice %256 {offsets = [0, 0], sizes = [1, 64], strides = [1, 1]} : vector<1x128xf32> to vector<1x64xf32>
    %286 = vector.broadcast %285 : vector<1x64xf32> to vector<2x64xf32>
    %287 = arith.mulf %284, %286 : vector<2x64xf32>
    %cst_32 = arith.constant dense<0.000000e+00> : vector<2xf32>
    %288 = vector.multi_reduction <add>, %287, %cst_32 [1] : vector<2x64xf32> to vector<2xf32>
    %289 = vector.shape_cast %288 : vector<2xf32> to vector<2x1xf32>
    %290 = vector.extract_strided_slice %256 {offsets = [0, 64], sizes = [1, 1], strides = [1, 1]} : vector<1x128xf32> to vector<1x1xf32>
    %291 = vector.broadcast %290 : vector<1x1xf32> to vector<2x1xf32>
    %292 = arith.addf %289, %291 : vector<2x1xf32>
    %c0_33 = arith.constant 0 : index
    %c0_34 = arith.constant 0 : index
    %293 = vector.load %arg3[%c0_33, %c0_34] : memref<2x1xf32, #tpu.memory_space<vmem>>, vector<2x1xf32>
    tpu.vector_store %arg3[%c0_33, %c0_34], %292 {strides = array<i32>} : memref<2x1xf32, #tpu.memory_space<vmem>>, vector<2x1xf32>,
    return
  }
}

</mosaic_0001>

<llo_original>
// kernel: forward.1
$region0: #{forward.1}
  #allocation0 [shape = 'u32[]', space=smem, size = 0x4, offset = 0x4, fixed_abs, tag = 'smem constant byte address 0x4 - core index']
  #allocation1 [shape = 'u32[144,128]{1,0:T(1,128)}', space=vmem, size = 0x12000, scoped, tag = 'internal scratch']
  %s0 = inlined_call_operand.vmem [shape: f32[2,8], index: 0, kind: input, shape index: {}]
  %s1 = inlined_call_operand.vmem [shape: f32[2,32], index: 1, kind: input, shape index: {}]
  %s2 = inlined_call_operand.hbm [shape: f32[272,128], index: 2, kind: input, shape index: {}]
  %s3 = inlined_call_operand.vmem [shape: f32[2,1], index: 3, kind: output, shape index: {}]
  %s4 = sld [smem:[#allocation0]]
  $region26: #{forward.1} parent=0
    _
  %s6 = ssub.s32 1, %s4
  %s7 = scalar_select 0, %s6, %s4
  $region1: #{forward.1} parent=0
    #allocation2 [shape = 'u8[139264]{0}', space=vmem, size = 0x22000, scoped, tag = 'input window, operand 2, single buffered']
    #allocation3 [shape = 's32[1]{0}', space=sflag, size = 0x4, scoped, tag = 'scoped memory for forward.1']
    %8 = vsyncpa [#allocation3], 0
    // Predicated region
    $region2: #{forward.1} parent=1 // pred_check
      _
    $region3: #{forward.1} parent=1 // pred_check_branch
      %10 = sbr.rel (0) target = $region5
    $region4: #{forward.1} parent=1 // pred_region
      _
    $region5: #{forward.1} parent=1 // pred_fallthru
      _
    // Predicated region
    $region6: #{forward.1} parent=1 // pred_check
      _
    $region7: #{forward.1} parent=1 // pred_check_branch
      %12 = sbr.rel (0) target = $region9
    $region8: #{forward.1} parent=1 // pred_region
      _
    $region9: #{forward.1} parent=1 // pred_fallthru
      _
    // Predicated region
    $region10: #{forward.1} parent=1 // pred_check
      _
    $region11: #{forward.1} parent=1 // pred_check_branch
      %14 = sbr.rel (0) target = $region13
    $region12: #{forward.1} parent=1 // pred_region
      %s16 = ssub.s32 4352, 4352
      %17 = vsyncadd [#allocation3], %s16
      %s18 = sshll.u32 [#allocation2], 4
      %s19 = int_to_ptr.vmem [resolvable:$true] %s18
      %24 = dma.hbm_to_vmem [thread:$0]  %s2, 4352, %s19, [#allocation3], 128, 128, 8
    $region13: #{forward.1} parent=1 // pred_fallthru
      _
    // Predicated region
    $region14: #{forward.1} parent=1 // pred_check
      _
    $region15: #{forward.1} parent=1 // pred_check_branch
      %26 = sbr.rel (0) target = $region17
    $region16: #{forward.1} parent=1 // pred_region
      %27 = dma.done [#allocation3], 4352
    $region17: #{forward.1} parent=1 // pred_fallthru
      _
    %v29 = vld [vmem:[%s0] sm:$0x3]
    %v30 = vld [vmem:[%s1] sm:$0x3]
    %v31 = vld [vmem:[#allocation2] sm:$0xff]
    %v32 = vld [vmem:[#allocation2 + $0x8] sm:$0xff]
    %v33 = vld [vmem:[#allocation2 + $0x10] sm:$0xff]
    %v34 = vld [vmem:[#allocation2 + $0x18] sm:$0xff]
    %v35 = vld [vmem:[#allocation2 + $0x20] sm:$0xff]
    %v36 = vld [vmem:[#allocation2 + $0x28] sm:$0xff]
    %v37 = vld [vmem:[#allocation2 + $0x30] sm:$0xff]
    %v38 = vld [vmem:[#allocation2 + $0x38] sm:$0xff]
    %v39 = vld [vmem:[#allocation2 + $0x40] sm:$0xff]
    %v40 = vld [vmem:[#allocation2 + $0x48] sm:$0xff]
    %v41 = vld [vmem:[#allocation2 + $0x50] sm:$0xff]
    %v42 = vld [vmem:[#allocation2 + $0x58] sm:$0xff]
    %v43 = vld [vmem:[#allocation2 + $0x60] sm:$0xff]
    %v44 = vld [vmem:[#allocation2 + $0x68] sm:$0xff]
    %v45 = vld [vmem:[#allocation2 + $0x70] sm:$0xff]
    %v46 = vld [vmem:[#allocation2 + $0x78] sm:$0xff]
    %v47 = vpack.c.bf16 %v32, %v31
    %v48 = vpack.c.bf16 %v34, %v33
    %v49 = vpack.c.bf16 %v36, %v35
    %v50 = vpack.c.bf16 %v38, %v37
    %v51 = vpack.c.bf16 %v40, %v39
    %v52 = vpack.c.bf16 %v42, %v41
    %v53 = vpack.c.bf16 %v44, %v43
    %v54 = vpack.c.bf16 %v46, %v45
    %v55 = vld [vmem:[#allocation2 + $0x80] sm:$0x1]
    %v56 = vld [vmem:[#allocation2 + $0x81] sm:$0x1]
    %v57 = vld [vmem:[#allocation2 + $0x82] sm:$0x1]
    %v58 = vld [vmem:[#allocation2 + $0x83] sm:$0x1]
    %v59 = vld [vmem:[#allocation2 + $0x84] sm:$0x1]
    %v60 = vld [vmem:[#allocation2 + $0x85] sm:$0x1]
    %v61 = vld [vmem:[#allocation2 + $0x86] sm:$0x1]
    %v62 = vlaneseq
    %v63 = vshrl.u32 %v62, 7
    %v64 = vsub.s32 0, %v63
    %v65 = vrot.slane %v60, %v64
    %67 = vset.pattern.permute.xlu0 0
    %68 = vperm.xlu0 %67, %v29
    %v69 = vpop.permute.xlu0 %68
    %v71 = vlaneseq
    %v72 = vshrl.u32 %v71, 7
    %v73 = vsub.s32 0, %v72
    %v74 = vrot.slane %v55, %v73
    %v75 = vmul.f32 %v69, %v74
    %77 = vset.pattern.permute.xlu0 0
    %78 = vperm.xlu0 %77, %v30
    %v79 = vpop.permute.xlu0 %78
    %v81 = vlaneseq
    %v82 = vshrl.u32 %v81, 7
    %v83 = vsub.s32 0, %v82
    %v84 = vrot.slane %v56, %v83
    %v85 = vmul.f32 %v79, %v84
    %v86 = vadd.f32 %v75, %v85
    %87 = vset.pattern.permute.xlu0 1
    %88 = vperm.xlu0 %87, %v30
    %v89 = vpop.permute.xlu0 %88
    %v91 = vlaneseq
    %v92 = vshrl.u32 %v91, 7
    %v93 = vsub.s32 0, %v92
    %v94 = vrot.slane %v57, %v93
    %v95 = vmul.f32 %v89, %v94
    %v96 = vadd.f32 %v86, %v95
    %97 = vset.pattern.permute.xlu0 2
    %98 = vperm.xlu0 %97, %v30
    %v99 = vpop.permute.xlu0 %98
    %v101 = vlaneseq
    %v102 = vshrl.u32 %v101, 7
    %v103 = vsub.s32 0, %v102
    %v104 = vrot.slane %v58, %v103
    %v105 = vmul.f32 %v99, %v104
    %v106 = vadd.f32 %v96, %v105
    %107 = vset.pattern.permute.xlu0 3
    %108 = vperm.xlu0 %107, %v30
    %v109 = vpop.permute.xlu0 %108
    %v111 = vlaneseq
    %v112 = vshrl.u32 %v111, 7
    %v113 = vsub.s32 0, %v112
    %v114 = vrot.slane %v59, %v113
    %v115 = vmul.f32 %v109, %v114
    %v116 = vadd.f32 %v106, %v115
    %v117 = vadd.f32 %v65, %v116
    %v118 = vtanh.pop %v117
    %v119 = vadd.f32 %v60, %v61
    %v120 = vlaneseq
    %v121 = vshrl.u32 %v120, 7
    %v122 = vsub.s32 0, %v121
    %v123 = vrot.slane %v119, %v122
    %124 = vset.pattern.permute.xlu0 1
    %125 = vperm.xlu0 %124, %v29
    %v126 = vpop.permute.xlu0 %125
    %v128 = vmul.f32 %v126, %v74
    %129 = vset.pattern.permute.xlu0 4
    %130 = vperm.xlu0 %129, %v30
    %v131 = vpop.permute.xlu0 %130
    %v133 = vmul.f32 %v131, %v84
    %v134 = vadd.f32 %v128, %v133
    %135 = vset.pattern.permute.xlu0 5
    %136 = vperm.xlu0 %135, %v30
    %v137 = vpop.permute.xlu0 %136
    %v139 = vmul.f32 %v137, %v94
    %v140 = vadd.f32 %v134, %v139
    %141 = vset.pattern.permute.xlu0 6
    %142 = vperm.xlu0 %141, %v30
    %v143 = vpop.permute.xlu0 %142
    %v145 = vmul.f32 %v143, %v104
    %v146 = vadd.f32 %v140, %v145
    %147 = vset.pattern.permute.xlu0 7
    %148 = vperm.xlu0 %147, %v30
    %v149 = vpop.permute.xlu0 %148
    %v151 = vmul.f32 %v149, %v114
    %v152 = vadd.f32 %v146, %v151
    %v153 = vadd.f32 %v123, %v152
    %v154 = vpack.c.bf16 %v118, %v118
    %155 = vmatprep.subr.bf16.mxu0 0
    %156 = vmatpush1.bf16.msra.mxu0 %v54
    %157 = vmatprep.subr.bf16.mxu0 0
    %158 = vmatpush1.bf16.msra.mxu0 %v53
    %159 = vmatprep.subr.bf16.mxu0 0
    %160 = vmatpush1.bf16.msra.mxu0 %v52
    %161 = vmatprep.subr.bf16.mxu0 0
    %162 = vmatpush1.bf16.msra.mxu0 %v51
    %163 = vmatprep.subr.bf16.mxu0 0
    %164 = vmatpush1.bf16.msra.mxu0 %v50
    %165 = vmatprep.subr.bf16.mxu0 0
    %166 = vmatpush1.bf16.msra.mxu0 %v49
    %167 = vmatprep.subr.bf16.mxu0 0
    %168 = vmatpush1.bf16.msra.mxu0 %v48
    %169 = vmatprep.subr.bf16.mxu0 0
    %170 = vmatpush1.bf16.msra.mxu0 %v47
    %171 = vmatprep.subr.bf16.mxu0 0
    %172 = vmatpush2.bf16.msra.mxu0 0
    %173 = vmatprep.subr.bf16.mxu0 0
    %174 = vmatpush2.bf16.msra.mxu0 0
    %175 = vmatprep.subr.bf16.mxu0 0
    %176 = vmatpush2.bf16.msra.mxu0 0
    %177 = vmatprep.subr.bf16.mxu0 0
    %178 = vmatpush2.bf16.msra.mxu0 0
    %179 = vmatprep.subr.bf16.mxu0 0
    %180 = vmatpush2.bf16.msra.mxu0 0
    %181 = vmatprep.subr.bf16.mxu0 0
    %182 = vmatpush2.bf16.msra.mxu0 0
    %183 = vmatprep.subr.bf16.mxu0 0
    %184 = vmatpush2.bf16.msra.mxu0 0
    %185 = vmatprep.subr.bf16.mxu0 0
    %186 = vmatpush2.bf16.msra.mxu0 0
    %187 = vmatprep.mubr.bf16.mxu0 0
    %188 = vmatmul.mubr.bf16.gmra.mxu0 %v154
    %v189 = vpop.f32.mrf.mxu0
    %v190 = vadd.f32 0.0, %v189
    %v191 = vpop.f32.mrf.mxu0
    %v192 = vpop.f32.mrf.mxu0
    %v193 = vpop.f32.mrf.mxu0
    %194 = vdwg.mxu0
    %v195 = vadd.f32 %v153, %v190
    %v196 = vtanh.pop %v195
    %197 = vset.pattern.permute.xlu0 2
    %198 = vperm.xlu0 %197, %v29
    %v199 = vpop.permute.xlu0 %198
    %v201 = vmul.f32 %v199, %v74
    %202 = vset.pattern.permute.xlu0 8
    %203 = vperm.xlu0 %202, %v30
    %v204 = vpop.permute.xlu0 %203
    %v206 = vmul.f32 %v204, %v84
    %v207 = vadd.f32 %v201, %v206
    %208 = vset.pattern.permute.xlu0 9
    %209 = vperm.xlu0 %208, %v30
    %v210 = vpop.permute.xlu0 %209
    %v212 = vmul.f32 %v210, %v94
    %v213 = vadd.f32 %v207, %v212
    %214 = vset.pattern.permute.xlu0 10
    %215 = vperm.xlu0 %214, %v30
    %v216 = vpop.permute.xlu0 %215
    %v218 = vmul.f32 %v216, %v104
    %v219 = vadd.f32 %v213, %v218
    %220 = vset.pattern.permute.xlu0 11
    %221 = vperm.xlu0 %220, %v30
    %v222 = vpop.permute.xlu0 %221
    %v224 = vmul.f32 %v222, %v114
    %v225 = vadd.f32 %v219, %v224
    %v226 = vadd.f32 %v123, %v225
    %v227 = vpack.c.bf16 %v196, %v196
    %228 = vmatprep.subr.bf16.mxu0 0
    %229 = vmatpush1.bf16.msra.mxu0 %v54
    %230 = vmatprep.subr.bf16.mxu0 0
    %231 = vmatpush1.bf16.msra.mxu0 %v53
    %232 = vmatprep.subr.bf16.mxu0 0
    %233 = vmatpush1.bf16.msra.mxu0 %v52
    %234 = vmatprep.subr.bf16.mxu0 0
    %235 = vmatpush1.bf16.msra.mxu0 %v51
    %236 = vmatprep.subr.bf16.mxu0 0
    %237 = vmatpush1.bf16.msra.mxu0 %v50
    %238 = vmatprep.subr.bf16.mxu0 0
    %239 = vmatpush1.bf16.msra.mxu0 %v49
    %240 = vmatprep.subr.bf16.mxu0 0
    %241 = vmatpush1.bf16.msra.mxu0 %v48
    %242 = vmatprep.subr.bf16.mxu0 0
    %243 = vmatpush1.bf16.msra.mxu0 %v47
    %244 = vmatprep.subr.bf16.mxu0 0
    %245 = vmatpush2.bf16.msra.mxu0 0
    %246 = vmatprep.subr.bf16.mxu0 0
    %247 = vmatpush2.bf16.msra.mxu0 0
    %248 = vmatprep.subr.bf16.mxu0 0
    %249 = vmatpush2.bf16.msra.mxu0 0
    %250 = vmatprep.subr.bf16.mxu0 0
    %251 = vmatpush2.bf16.msra.mxu0 0
    %252 = vmatprep.subr.bf16.mxu0 0
    %253 = vmatpush2.bf16.msra.mxu0 0
    %254 = vmatprep.subr.bf16.mxu0 0
    %255 = vmatpush2.bf16.msra.mxu0 0
    %256 = vmatprep.subr.bf16.mxu0 0
    %257 = vmatpush2.bf16.msra.mxu0 0
    %258 = vmatprep.subr.bf16.mxu0 0
    %259 = vmatpush2.bf16.msra.mxu0 0
    %260 = vmatprep.mubr.bf16.mxu0 0
    %261 = vmatmul.mubr.bf16.gmra.mxu0 %v227
    %v262 = vpop.f32.mrf.mxu0
    %v263 = vadd.f32 0.0, %v262
    %v264 = vpop.f32.mrf.mxu0
    %v265 = vpop.f32.mrf.mxu0
    %v266 = vpop.f32.mrf.mxu0
    %267 = vdwg.mxu0
    %v268 = vadd.f32 %v226, %v263
    %v269 = vtanh.pop %v268
    %270 = vset.pattern.permute.xlu0 3
    %271 = vperm.xlu0 %270, %v29
    %v272 = vpop.permute.xlu0 %271
    %v274 = vmul.f32 %v272, %v74
    %275 = vset.pattern.permute.xlu0 12
    %276 = vperm.xlu0 %275, %v30
    %v277 = vpop.permute.xlu0 %276
    %v279 = vmul.f32 %v277, %v84
    %v280 = vadd.f32 %v274, %v279
    %281 = vset.pattern.permute.xlu0 13
    %282 = vperm.xlu0 %281, %v30
    %v283 = vpop.permute.xlu0 %282
    %v285 = vmul.f32 %v283, %v94
    %v286 = vadd.f32 %v280, %v285
    %287 = vset.pattern.permute.xlu0 14
    %288 = vperm.xlu0 %287, %v30
    %v289 = vpop.permute.xlu0 %288
    %v291 = vmul.f32 %v289, %v104
    %v292 = vadd.f32 %v286, %v291
    %293 = vset.pattern.permute.xlu0 15
    %294 = vperm.xlu0 %293, %v30
    %v295 = vpop.permute.xlu0 %294
    %v297 = vmul.f32 %v295, %v114
    %v298 = vadd.f32 %v292, %v297
    %v299 = vadd.f32 %v123, %v298
    %v300 = vpack.c.bf16 %v269, %v269
    %301 = vmatprep.subr.bf16.mxu0 0
    %302 = vmatpush1.bf16.msra.mxu0 %v54
    %303 = vmatprep.subr.bf16.mxu0 0
    %304 = vmatpush1.bf16.msra.mxu0 %v53
    %305 = vmatprep.subr.bf16.mxu0 0
    %306 = vmatpush1.bf16.msra.mxu0 %v52
    %307 = vmatprep.subr.bf16.mxu0 0
    %308 = vmatpush1.bf16.msra.mxu0 %v51
    %309 = vmatprep.subr.bf16.mxu0 0
    %310 = vmatpush1.bf16.msra.mxu0 %v50
    %311 = vmatprep.subr.bf16.mxu0 0
    %312 = vmatpush1.bf16.msra.mxu0 %v49
    %313 = vmatprep.subr.bf16.mxu0 0
    %314 = vmatpush1.bf16.msra.mxu0 %v48
    %315 = vmatprep.subr.bf16.mxu0 0
    %316 = vmatpush1.bf16.msra.mxu0 %v47
    %317 = vmatprep.subr.bf16.mxu0 0
    %318 = vmatpush2.bf16.msra.mxu0 0
    %319 = vmatprep.subr.bf16.mxu0 0
    %320 = vmatpush2.bf16.msra.mxu0 0
    %321 = vmatprep.subr.bf16.mxu0 0
    %322 = vmatpush2.bf16.msra.mxu0 0
    %323 = vmatprep.subr.bf16.mxu0 0
    %324 = vmatpush2.bf16.msra.mxu0 0
    %325 = vmatprep.subr.bf16.mxu0 0
    %326 = vmatpush2.bf16.msra.mxu0 0
    %327 = vmatprep.subr.bf16.mxu0 0
    %328 = vmatpush2.bf16.msra.mxu0 0
    %329 = vmatprep.subr.bf16.mxu0 0
    %330 = vmatpush2.bf16.msra.mxu0 0
    %331 = vmatprep.subr.bf16.mxu0 0
    %332 = vmatpush2.bf16.msra.mxu0 0
    %333 = vmatprep.mubr.bf16.mxu0 0
    %334 = vmatmul.mubr.bf16.gmra.mxu0 %v300
    %v335 = vpop.f32.mrf.mxu0
    %v336 = vadd.f32 0.0, %v335
    %v337 = vpop.f32.mrf.mxu0
    %v338 = vpop.f32.mrf.mxu0
    %v339 = vpop.f32.mrf.mxu0
    %340 = vdwg.mxu0
    %v341 = vadd.f32 %v299, %v336
    %v342 = vtanh.pop %v341
    %343 = vset.pattern.permute.xlu0 4
    %344 = vperm.xlu0 %343, %v29
    %v345 = vpop.permute.xlu0 %344
    %v347 = vmul.f32 %v345, %v74
    %348 = vset.pattern.permute.xlu0 16
    %349 = vperm.xlu0 %348, %v30
    %v350 = vpop.permute.xlu0 %349
    %v352 = vmul.f32 %v350, %v84
    %v353 = vadd.f32 %v347, %v352
    %354 = vset.pattern.permute.xlu0 17
    %355 = vperm.xlu0 %354, %v30
    %v356 = vpop.permute.xlu0 %355
    %v358 = vmul.f32 %v356, %v94
    %v359 = vadd.f32 %v353, %v358
    %360 = vset.pattern.permute.xlu0 18
    %361 = vperm.xlu0 %360, %v30
    %v362 = vpop.permute.xlu0 %361
    %v364 = vmul.f32 %v362, %v104
    %v365 = vadd.f32 %v359, %v364
    %366 = vset.pattern.permute.xlu0 19
    %367 = vperm.xlu0 %366, %v30
    %v368 = vpop.permute.xlu0 %367
    %v370 = vmul.f32 %v368, %v114
    %v371 = vadd.f32 %v365, %v370
    %v372 = vadd.f32 %v123, %v371
    %v373 = vpack.c.bf16 %v342, %v342
    %374 = vmatprep.subr.bf16.mxu0 0
    %375 = vmatpush1.bf16.msra.mxu0 %v54
    %376 = vmatprep.subr.bf16.mxu0 0
    %377 = vmatpush1.bf16.msra.mxu0 %v53
    %378 = vmatprep.subr.bf16.mxu0 0
    %379 = vmatpush1.bf16.msra.mxu0 %v52
    %380 = vmatprep.subr.bf16.mxu0 0
    %381 = vmatpush1.bf16.msra.mxu0 %v51
    %382 = vmatprep.subr.bf16.mxu0 0
    %383 = vmatpush1.bf16.msra.mxu0 %v50
    %384 = vmatprep.subr.bf16.mxu0 0
    %385 = vmatpush1.bf16.msra.mxu0 %v49
    %386 = vmatprep.subr.bf16.mxu0 0
    %387 = vmatpush1.bf16.msra.mxu0 %v48
    %388 = vmatprep.subr.bf16.mxu0 0
    %389 = vmatpush1.bf16.msra.mxu0 %v47
    %390 = vmatprep.subr.bf16.mxu0 0
    %391 = vmatpush2.bf16.msra.mxu0 0
    %392 = vmatprep.subr.bf16.mxu0 0
    %393 = vmatpush2.bf16.msra.mxu0 0
    %394 = vmatprep.subr.bf16.mxu0 0
    %395 = vmatpush2.bf16.msra.mxu0 0
    %396 = vmatprep.subr.bf16.mxu0 0
    %397 = vmatpush2.bf16.msra.mxu0 0
    %398 = vmatprep.subr.bf16.mxu0 0
    %399 = vmatpush2.bf16.msra.mxu0 0
    %400 = vmatprep.subr.bf16.mxu0 0
    %401 = vmatpush2.bf16.msra.mxu0 0
    %402 = vmatprep.subr.bf16.mxu0 0
    %403 = vmatpush2.bf16.msra.mxu0 0
    %404 = vmatprep.subr.bf16.mxu0 0
    %405 = vmatpush2.bf16.msra.mxu0 0
    %406 = vmatprep.mubr.bf16.mxu0 0
    %407 = vmatmul.mubr.bf16.gmra.mxu0 %v373
    %v408 = vpop.f32.mrf.mxu0
    %v409 = vadd.f32 0.0, %v408
    %v410 = vpop.f32.mrf.mxu0
    %v411 = vpop.f32.mrf.mxu0
    %v412 = vpop.f32.mrf.mxu0
    %413 = vdwg.mxu0
    %v414 = vadd.f32 %v372, %v409
    %v415 = vtanh.pop %v414
    %416 = vset.pattern.permute.xlu0 5
    %417 = vperm.xlu0 %416, %v29
    %v418 = vpop.permute.xlu0 %417
    %v420 = vmul.f32 %v418, %v74
    %421 = vset.pattern.permute.xlu0 20
    %422 = vperm.xlu0 %421, %v30
    %v423 = vpop.permute.xlu0 %422
    %v425 = vmul.f32 %v423, %v84
    %v426 = vadd.f32 %v420, %v425
    %427 = vset.pattern.permute.xlu0 21
    %428 = vperm.xlu0 %427, %v30
    %v429 = vpop.permute.xlu0 %428
    %v431 = vmul.f32 %v429, %v94
    %v432 = vadd.f32 %v426, %v431
    %433 = vset.pattern.permute.xlu0 22
    %434 = vperm.xlu0 %433, %v30
    %v435 = vpop.permute.xlu0 %434
    %v437 = vmul.f32 %v435, %v104
    %v438 = vadd.f32 %v432, %v437
    %439 = vset.pattern.permute.xlu0 23
    %440 = vperm.xlu0 %439, %v30
    %v441 = vpop.permute.xlu0 %440
    %v443 = vmul.f32 %v441, %v114
    %v444 = vadd.f32 %v438, %v443
    %v445 = vadd.f32 %v123, %v444
    %v446 = vpack.c.bf16 %v415, %v415
    %447 = vmatprep.subr.bf16.mxu0 0
    %448 = vmatpush1.bf16.msra.mxu0 %v54
    %449 = vmatprep.subr.bf16.mxu0 0
    %450 = vmatpush1.bf16.msra.mxu0 %v53
    %451 = vmatprep.subr.bf16.mxu0 0
    %452 = vmatpush1.bf16.msra.mxu0 %v52
    %453 = vmatprep.subr.bf16.mxu0 0
    %454 = vmatpush1.bf16.msra.mxu0 %v51
    %455 = vmatprep.subr.bf16.mxu0 0
    %456 = vmatpush1.bf16.msra.mxu0 %v50
    %457 = vmatprep.subr.bf16.mxu0 0
    %458 = vmatpush1.bf16.msra.mxu0 %v49
    %459 = vmatprep.subr.bf16.mxu0 0
    %460 = vmatpush1.bf16.msra.mxu0 %v48
    %461 = vmatprep.subr.bf16.mxu0 0
    %462 = vmatpush1.bf16.msra.mxu0 %v47
    %463 = vmatprep.subr.bf16.mxu0 0
    %464 = vmatpush2.bf16.msra.mxu0 0
    %465 = vmatprep.subr.bf16.mxu0 0
    %466 = vmatpush2.bf16.msra.mxu0 0
    %467 = vmatprep.subr.bf16.mxu0 0
    %468 = vmatpush2.bf16.msra.mxu0 0
    %469 = vmatprep.subr.bf16.mxu0 0
    %470 = vmatpush2.bf16.msra.mxu0 0
    %471 = vmatprep.subr.bf16.mxu0 0
    %472 = vmatpush2.bf16.msra.mxu0 0
    %473 = vmatprep.subr.bf16.mxu0 0
    %474 = vmatpush2.bf16.msra.mxu0 0
    %475 = vmatprep.subr.bf16.mxu0 0
    %476 = vmatpush2.bf16.msra.mxu0 0
    %477 = vmatprep.subr.bf16.mxu0 0
    %478 = vmatpush2.bf16.msra.mxu0 0
    %479 = vmatprep.mubr.bf16.mxu0 0
    %480 = vmatmul.mubr.bf16.gmra.mxu0 %v446
    %v481 = vpop.f32.mrf.mxu0
    %v482 = vadd.f32 0.0, %v481
    %v483 = vpop.f32.mrf.mxu0
    %v484 = vpop.f32.mrf.mxu0
    %v485 = vpop.f32.mrf.mxu0
    %486 = vdwg.mxu0
    %v487 = vadd.f32 %v445, %v482
    %v488 = vtanh.pop %v487
    %489 = vset.pattern.permute.xlu0 6
    %490 = vperm.xlu0 %489, %v29
    %v491 = vpop.permute.xlu0 %490
    %v493 = vmul.f32 %v491, %v74
    %494 = vset.pattern.permute.xlu0 24
    %495 = vperm.xlu0 %494, %v30
    %v496 = vpop.permute.xlu0 %495
    %v498 = vmul.f32 %v496, %v84
    %v499 = vadd.f32 %v493, %v498
    %500 = vset.pattern.permute.xlu0 25
    %501 = vperm.xlu0 %500, %v30
    %v502 = vpop.permute.xlu0 %501
    %v504 = vmul.f32 %v502, %v94
    %v505 = vadd.f32 %v499, %v504
    %506 = vset.pattern.permute.xlu0 26
    %507 = vperm.xlu0 %506, %v30
    %v508 = vpop.permute.xlu0 %507
    %v510 = vmul.f32 %v508, %v104
    %v511 = vadd.f32 %v505, %v510
    %512 = vset.pattern.permute.xlu0 27
    %513 = vperm.xlu0 %512, %v30
    %v514 = vpop.permute.xlu0 %513
    %v516 = vmul.f32 %v514, %v114
    %v517 = vadd.f32 %v511, %v516
    %v518 = vadd.f32 %v123, %v517
    %v519 = vpack.c.bf16 %v488, %v488
    %520 = vmatprep.subr.bf16.mxu0 0
    %521 = vmatpush1.bf16.msra.mxu0 %v54
    %522 = vmatprep.subr.bf16.mxu0 0
    %523 = vmatpush1.bf16.msra.mxu0 %v53
    %524 = vmatprep.subr.bf16.mxu0 0
    %525 = vmatpush1.bf16.msra.mxu0 %v52
    %526 = vmatprep.subr.bf16.mxu0 0
    %527 = vmatpush1.bf16.msra.mxu0 %v51
    %528 = vmatprep.subr.bf16.mxu0 0
    %529 = vmatpush1.bf16.msra.mxu0 %v50
    %530 = vmatprep.subr.bf16.mxu0 0
    %531 = vmatpush1.bf16.msra.mxu0 %v49
    %532 = vmatprep.subr.bf16.mxu0 0
    %533 = vmatpush1.bf16.msra.mxu0 %v48
    %534 = vmatprep.subr.bf16.mxu0 0
    %535 = vmatpush1.bf16.msra.mxu0 %v47
    %536 = vmatprep.subr.bf16.mxu0 0
    %537 = vmatpush2.bf16.msra.mxu0 0
    %538 = vmatprep.subr.bf16.mxu0 0
    %539 = vmatpush2.bf16.msra.mxu0 0
    %540 = vmatprep.subr.bf16.mxu0 0
    %541 = vmatpush2.bf16.msra.mxu0 0
    %542 = vmatprep.subr.bf16.mxu0 0
    %543 = vmatpush2.bf16.msra.mxu0 0
    %544 = vmatprep.subr.bf16.mxu0 0
    %545 = vmatpush2.bf16.msra.mxu0 0
    %546 = vmatprep.subr.bf16.mxu0 0
    %547 = vmatpush2.bf16.msra.mxu0 0
    %548 = vmatprep.subr.bf16.mxu0 0
    %549 = vmatpush2.bf16.msra.mxu0 0
    %550 = vmatprep.subr.bf16.mxu0 0
    %551 = vmatpush2.bf16.msra.mxu0 0
    %552 = vmatprep.mubr.bf16.mxu0 0
    %553 = vmatmul.mubr.bf16.gmra.mxu0 %v519
    %v554 = vpop.f32.mrf.mxu0
    %v555 = vadd.f32 0.0, %v554
    %v556 = vpop.f32.mrf.mxu0
    %v557 = vpop.f32.mrf.mxu0
    %v558 = vpop.f32.mrf.mxu0
    %559 = vdwg.mxu0
    %v560 = vadd.f32 %v518, %v555
    %v561 = vtanh.pop %v560
    %562 = vset.pattern.permute.xlu0 7
    %563 = vperm.xlu0 %562, %v29
    %v564 = vpop.permute.xlu0 %563
    %v566 = vmul.f32 %v564, %v74
    %567 = vset.pattern.permute.xlu0 28
    %568 = vperm.xlu0 %567, %v30
    %v569 = vpop.permute.xlu0 %568
    %v571 = vmul.f32 %v569, %v84
    %v572 = vadd.f32 %v566, %v571
    %573 = vset.pattern.permute.xlu0 29
    %574 = vperm.xlu0 %573, %v30
    %v575 = vpop.permute.xlu0 %574
    %v577 = vmul.f32 %v575, %v94
    %v578 = vadd.f32 %v572, %v577
    %579 = vset.pattern.permute.xlu0 30
    %580 = vperm.xlu0 %579, %v30
    %v581 = vpop.permute.xlu0 %580
    %v583 = vmul.f32 %v581, %v104
    %v584 = vadd.f32 %v578, %v583
    %585 = vset.pattern.permute.xlu0 31
    %586 = vperm.xlu0 %585, %v30
    %v587 = vpop.permute.xlu0 %586
    %v589 = vmul.f32 %v587, %v114
    %v590 = vadd.f32 %v584, %v589
    %v591 = vadd.f32 %v123, %v590
    %v592 = vpack.c.bf16 %v561, %v561
    %593 = vmatprep.subr.bf16.mxu0 0
    %594 = vmatpush1.bf16.msra.mxu0 %v54
    %595 = vmatprep.subr.bf16.mxu0 0
    %596 = vmatpush1.bf16.msra.mxu0 %v53
    %597 = vmatprep.subr.bf16.mxu0 0
    %598 = vmatpush1.bf16.msra.mxu0 %v52
    %599 = vmatprep.subr.bf16.mxu0 0
    %600 = vmatpush1.bf16.msra.mxu0 %v51
    %601 = vmatprep.subr.bf16.mxu0 0
    %602 = vmatpush1.bf16.msra.mxu0 %v50
    %603 = vmatprep.subr.bf16.mxu0 0
    %604 = vmatpush1.bf16.msra.mxu0 %v49
    %605 = vmatprep.subr.bf16.mxu0 0
    %606 = vmatpush1.bf16.msra.mxu0 %v48
    %607 = vmatprep.subr.bf16.mxu0 0
    %608 = vmatpush1.bf16.msra.mxu0 %v47
    %609 = vmatprep.subr.bf16.mxu0 0
    %610 = vmatpush2.bf16.msra.mxu0 0
    %611 = vmatprep.subr.bf16.mxu0 0
    %612 = vmatpush2.bf16.msra.mxu0 0
    %613 = vmatprep.subr.bf16.mxu0 0
    %614 = vmatpush2.bf16.msra.mxu0 0
    %615 = vmatprep.subr.bf16.mxu0 0
    %616 = vmatpush2.bf16.msra.mxu0 0
    %617 = vmatprep.subr.bf16.mxu0 0
    %618 = vmatpush2.bf16.msra.mxu0 0
    %619 = vmatprep.subr.bf16.mxu0 0
    %620 = vmatpush2.bf16.msra.mxu0 0
    %621 = vmatprep.subr.bf16.mxu0 0
    %622 = vmatpush2.bf16.msra.mxu0 0
    %623 = vmatprep.subr.bf16.mxu0 0
    %624 = vmatpush2.bf16.msra.mxu0 0
    %625 = vmatprep.mubr.bf16.mxu0 0
    %626 = vmatmul.mubr.bf16.gmra.mxu0 %v592
    %v627 = vpop.f32.mrf.mxu0
    %v628 = vadd.f32 0.0, %v627
    %v629 = vpop.f32.mrf.mxu0
    %v630 = vpop.f32.mrf.mxu0
    %v631 = vpop.f32.mrf.mxu0
    %632 = vdwg.mxu0
    %v633 = vadd.f32 %v591, %v628
    %v634 = vtanh.pop %v633
    %v635 = vlaneseq
    %v636 = vshrl.u32 %v635, 7
    %v637 = vsub.s32 0, %v636
    %v638 = vrot.slane %v61, %v637
    %v639 = vpack.c.bf16 %v634, %v634
    %640 = vmatprep.subr.bf16.mxu0 0
    %641 = vmatpush1.bf16.msra.mxu0 %v54
    %642 = vmatprep.subr.bf16.mxu0 0
    %643 = vmatpush1.bf16.msra.mxu0 %v53
    %644 = vmatprep.subr.bf16.mxu0 0
    %645 = vmatpush1.bf16.msra.mxu0 %v52
    %646 = vmatprep.subr.bf16.mxu0 0
    %647 = vmatpush1.bf16.msra.mxu0 %v51
    %648 = vmatprep.subr.bf16.mxu0 0
    %649 = vmatpush1.bf16.msra.mxu0 %v50
    %650 = vmatprep.subr.bf16.mxu0 0
    %651 = vmatpush1.bf16.msra.mxu0 %v49
    %652 = vmatprep.subr.bf16.mxu0 0
    %653 = vmatpush1.bf16.msra.mxu0 %v48
    %654 = vmatprep.subr.bf16.mxu0 0
    %655 = vmatpush1.bf16.msra.mxu0 %v47
    %656 = vmatprep.subr.bf16.mxu0 0
    %657 = vmatpush2.bf16.msra.mxu0 0
    %658 = vmatprep.subr.bf16.mxu0 0
    %659 = vmatpush2.bf16.msra.mxu0 0
    %660 = vmatprep.subr.bf16.mxu0 0
    %661 = vmatpush2.bf16.msra.mxu0 0
    %662 = vmatprep.subr.bf16.mxu0 0
    %663 = vmatpush2.bf16.msra.mxu0 0
    %664 = vmatprep.subr.bf16.mxu0 0
    %665 = vmatpush2.bf16.msra.mxu0 0
    %666 = vmatprep.subr.bf16.mxu0 0
    %667 = vmatpush2.bf16.msra.mxu0 0
    %668 = vmatprep.subr.bf16.mxu0 0
    %669 = vmatpush2.bf16.msra.mxu0 0
    %670 = vmatprep.subr.bf16.mxu0 0
    %671 = vmatpush2.bf16.msra.mxu0 0
    %672 = vmatprep.mubr.bf16.mxu0 0
    %673 = vmatmul.mubr.bf16.gmra.mxu0 %v639
    %v674 = vpop.f32.mrf.mxu0
    %v675 = vadd.f32 0.0, %v674
    %v676 = vpop.f32.mrf.mxu0
    %v677 = vpop.f32.mrf.mxu0
    %v678 = vpop.f32.mrf.mxu0
    %679 = vdwg.mxu0
    %v680 = vadd.f32 %v638, %v675
    %v681 = vtanh.pop %v680
    %v682 = vld [vmem:[#allocation2 + $0x88] sm:$0xff]
    %v683 = vld [vmem:[#allocation2 + $0x90] sm:$0xff]
    %v684 = vld [vmem:[#allocation2 + $0x98] sm:$0xff]
    %v685 = vld [vmem:[#allocation2 + $0xa0] sm:$0xff]
    %v686 = vld [vmem:[#allocation2 + $0xa8] sm:$0xff]
    %v687 = vld [vmem:[#allocation2 + $0xb0] sm:$0xff]
    %v688 = vld [vmem:[#allocation2 + $0xb8] sm:$0xff]
    %v689 = vld [vmem:[#allocation2 + $0xc0] sm:$0xff]
    %v690 = vld [vmem:[#allocation2 + $0xc8] sm:$0xff]
    %v691 = vld [vmem:[#allocation2 + $0xd0] sm:$0xff]
    %v692 = vld [vmem:[#allocation2 + $0xd8] sm:$0xff]
    %v693 = vld [vmem:[#allocation2 + $0xe0] sm:$0xff]
    %v694 = vld [vmem:[#allocation2 + $0xe8] sm:$0xff]
    %v695 = vld [vmem:[#allocation2 + $0xf0] sm:$0xff]
    %v696 = vld [vmem:[#allocation2 + $0xf8] sm:$0xff]
    %v697 = vld [vmem:[#allocation2 + $0x100] sm:$0xff]
    %v698 = vld [vmem:[#allocation2 + $0x108] sm:$0x1]
    %v699 = vld [vmem:[#allocation2 + $0x109] sm:$0x1]
    %v700 = vld [vmem:[#allocation2 + $0x10a] sm:$0x1]
    %v701 = vlaneseq
    %v702 = vshrl.u32 %v701, 7
    %v703 = vsub.s32 0, %v702
    %v704 = vrot.slane %v698, %v703
    %vm705 = vcmask 523264
    %v707 = vsel %vm705, %v681, 0
    %709 = vmatprep.subr.mxu0 0.0
    %710 = vmatpush1.msra.mxu0 0.0
    %711 = vmatprep.subr.mxu0 0.0
    %712 = vmatpush1.msra.mxu0 0.0
    %713 = vmatprep.subr.mxu0 0.0
    %714 = vmatpush1.msra.mxu0 0.0
    %715 = vmatprep.subr.mxu0 0.0
    %716 = vmatpush1.msra.mxu0 0.0
    %717 = vmatprep.subr.mxu0 0.0
    %718 = vmatpush1.msra.mxu0 0.0
    %719 = vmatprep.subr.mxu0 0.0
    %720 = vmatpush1.msra.mxu0 0.0
    %721 = vmatprep.subr.mxu0 0.0
    %722 = vmatpush1.msra.mxu0 0.0
    %723 = vmatprep.subr.mxu0 0.0
    %724 = vmatpush1.msra.mxu0 0.0
    %725 = vmatprep.subr.mxu0 0.0
    %726 = vmatpush1.msra.mxu0 %v689
    %727 = vmatprep.subr.mxu0 0.0
    %728 = vmatpush1.msra.mxu0 %v688
    %729 = vmatprep.subr.mxu0 0.0
    %730 = vmatpush1.msra.mxu0 %v687
    %731 = vmatprep.subr.mxu0 0.0
    %732 = vmatpush1.msra.mxu0 %v686
    %733 = vmatprep.subr.mxu0 0.0
    %734 = vmatpush1.msra.mxu0 %v685
    %735 = vmatprep.subr.mxu0 0.0
    %736 = vmatpush1.msra.mxu0 %v684
    %737 = vmatprep.subr.mxu0 0.0
    %738 = vmatpush1.msra.mxu0 %v683
    %739 = vmatprep.subr.mxu0 0.0
    %740 = vmatpush1.msra.mxu0 %v682
    %741 = vmatprep.subr.mxu0 0.0
    %742 = vmatpush2.msra.mxu0 0.0
    %743 = vmatprep.subr.mxu0 0.0
    %744 = vmatpush2.msra.mxu0 0.0
    %745 = vmatprep.subr.mxu0 0.0
    %746 = vmatpush2.msra.mxu0 0.0
    %747 = vmatprep.subr.mxu0 0.0
    %748 = vmatpush2.msra.mxu0 0.0
    %749 = vmatprep.subr.mxu0 0.0
    %750 = vmatpush2.msra.mxu0 0.0
    %751 = vmatprep.subr.mxu0 0.0
    %752 = vmatpush2.msra.mxu0 0.0
    %753 = vmatprep.subr.mxu0 0.0
    %754 = vmatpush2.msra.mxu0 0.0
    %755 = vmatprep.subr.mxu0 0.0
    %756 = vmatpush2.msra.mxu0 0.0
    %757 = vmatprep.subr.mxu0 0.0
    %758 = vmatpush2.msra.mxu0 0.0
    %759 = vmatprep.subr.mxu0 0.0
    %760 = vmatpush2.msra.mxu0 0.0
    %761 = vmatprep.subr.mxu0 0.0
    %762 = vmatpush2.msra.mxu0 0.0
    %763 = vmatprep.subr.mxu0 0.0
    %764 = vmatpush2.msra.mxu0 0.0
    %765 = vmatprep.subr.mxu0 0.0
    %766 = vmatpush2.msra.mxu0 0.0
    %767 = vmatprep.subr.mxu0 0.0
    %768 = vmatpush2.msra.mxu0 0.0
    %769 = vmatprep.subr.mxu0 0.0
    %770 = vmatpush2.msra.mxu0 0.0
    %771 = vmatprep.subr.mxu0 0.0
    %772 = vmatpush2.msra.mxu0 0.0
    %773 = vmatprep.mubr.f32.mxu0 0.0
    %774 = vmatmul.mubr.f32.gmra.mxu0 %v707
    %v775 = vpop.f32.mrf.mxu0
    %v776 = vadd.f32 %v704, %v775
    %v777 = vpop.f32.mrf.mxu0
    %778 = vdwg.mxu0
    %v779 = vmax.f32 %v776, 0.0
    %788 = vrot.lane.b32.xlu0 %v682, 64
    %v789 = vpop.permute.xlu0 %788
    %790 = vrot.lane.b32.xlu0 %v683, 64
    %v791 = vpop.permute.xlu0 %790
    %792 = vrot.lane.b32.xlu0 %v684, 64
    %v793 = vpop.permute.xlu0 %792
    %794 = vrot.lane.b32.xlu0 %v685, 64
    %v795 = vpop.permute.xlu0 %794
    %796 = vrot.lane.b32.xlu0 %v686, 64
    %v797 = vpop.permute.xlu0 %796
    %798 = vrot.lane.b32.xlu0 %v687, 64
    %v799 = vpop.permute.xlu0 %798
    %800 = vrot.lane.b32.xlu0 %v688, 64
    %v801 = vpop.permute.xlu0 %800
    %802 = vrot.lane.b32.xlu0 %v689, 64
    %v803 = vpop.permute.xlu0 %802
    %813 = vrot.lane.b32.xlu0 %v704, 64
    %v814 = vpop.permute.xlu0 %813
    %v817 = vsel %vm705, %v779, 0
    %819 = vmatprep.subr.mxu0 0.0
    %820 = vmatpush1.msra.mxu0 0.0
    %821 = vmatprep.subr.mxu0 0.0
    %822 = vmatpush1.msra.mxu0 0.0
    %823 = vmatprep.subr.mxu0 0.0
    %824 = vmatpush1.msra.mxu0 0.0
    %825 = vmatprep.subr.mxu0 0.0
    %826 = vmatpush1.msra.mxu0 0.0
    %827 = vmatprep.subr.mxu0 0.0
    %828 = vmatpush1.msra.mxu0 0.0
    %829 = vmatprep.subr.mxu0 0.0
    %830 = vmatpush1.msra.mxu0 0.0
    %831 = vmatprep.subr.mxu0 0.0
    %832 = vmatpush1.msra.mxu0 0.0
    %833 = vmatprep.subr.mxu0 0.0
    %834 = vmatpush1.msra.mxu0 0.0
    %835 = vmatprep.subr.mxu0 0.0
    %836 = vmatpush1.msra.mxu0 %v803
    %837 = vmatprep.subr.mxu0 0.0
    %838 = vmatpush1.msra.mxu0 %v801
    %839 = vmatprep.subr.mxu0 0.0
    %840 = vmatpush1.msra.mxu0 %v799
    %841 = vmatprep.subr.mxu0 0.0
    %842 = vmatpush1.msra.mxu0 %v797
    %843 = vmatprep.subr.mxu0 0.0
    %844 = vmatpush1.msra.mxu0 %v795
    %845 = vmatprep.subr.mxu0 0.0
    %846 = vmatpush1.msra.mxu0 %v793
    %847 = vmatprep.subr.mxu0 0.0
    %848 = vmatpush1.msra.mxu0 %v791
    %849 = vmatprep.subr.mxu0 0.0
    %850 = vmatpush1.msra.mxu0 %v789
    %851 = vmatprep.subr.mxu0 0.0
    %852 = vmatpush2.msra.mxu0 0.0
    %853 = vmatprep.subr.mxu0 0.0
    %854 = vmatpush2.msra.mxu0 0.0
    %855 = vmatprep.subr.mxu0 0.0
    %856 = vmatpush2.msra.mxu0 0.0
    %857 = vmatprep.subr.mxu0 0.0
    %858 = vmatpush2.msra.mxu0 0.0
    %859 = vmatprep.subr.mxu0 0.0
    %860 = vmatpush2.msra.mxu0 0.0
    %861 = vmatprep.subr.mxu0 0.0
    %862 = vmatpush2.msra.mxu0 0.0
    %863 = vmatprep.subr.mxu0 0.0
    %864 = vmatpush2.msra.mxu0 0.0
    %865 = vmatprep.subr.mxu0 0.0
    %866 = vmatpush2.msra.mxu0 0.0
    %867 = vmatprep.subr.mxu0 0.0
    %868 = vmatpush2.msra.mxu0 0.0
    %869 = vmatprep.subr.mxu0 0.0
    %870 = vmatpush2.msra.mxu0 0.0
    %871 = vmatprep.subr.mxu0 0.0
    %872 = vmatpush2.msra.mxu0 0.0
    %873 = vmatprep.subr.mxu0 0.0
    %874 = vmatpush2.msra.mxu0 0.0
    %875 = vmatprep.subr.mxu0 0.0
    %876 = vmatpush2.msra.mxu0 0.0
    %877 = vmatprep.subr.mxu0 0.0
    %878 = vmatpush2.msra.mxu0 0.0
    %879 = vmatprep.subr.mxu0 0.0
    %880 = vmatpush2.msra.mxu0 0.0
    %881 = vmatprep.subr.mxu0 0.0
    %882 = vmatpush2.msra.mxu0 0.0
    %883 = vmatprep.mubr.f32.mxu0 0.0
    %884 = vmatmul.mubr.f32.gmra.mxu0 %v817
    %v885 = vpop.f32.mrf.mxu0
    %v886 = vadd.f32 %v814, %v885
    %v887 = vpop.f32.mrf.mxu0
    %888 = vdwg.mxu0
    %v889 = vmax.f32 %v886, 0.0
    %v890 = vlaneseq
    %v891 = vshrl.u32 %v890, 7
    %v892 = vsub.s32 0, %v891
    %v893 = vrot.slane %v699, %v892
    %v895 = vsel %vm705, %v889, 0
    %897 = vmatprep.subr.mxu0 0.0
    %898 = vmatpush1.msra.mxu0 0.0
    %899 = vmatprep.subr.mxu0 0.0
    %900 = vmatpush1.msra.mxu0 0.0
    %901 = vmatprep.subr.mxu0 0.0
    %902 = vmatpush1.msra.mxu0 0.0
    %903 = vmatprep.subr.mxu0 0.0
    %904 = vmatpush1.msra.mxu0 0.0
    %905 = vmatprep.subr.mxu0 0.0
    %906 = vmatpush1.msra.mxu0 0.0
    %907 = vmatprep.subr.mxu0 0.0
    %908 = vmatpush1.msra.mxu0 0.0
    %909 = vmatprep.subr.mxu0 0.0
    %910 = vmatpush1.msra.mxu0 0.0
    %911 = vmatprep.subr.mxu0 0.0
    %912 = vmatpush1.msra.mxu0 0.0
    %913 = vmatprep.subr.mxu0 0.0
    %914 = vmatpush1.msra.mxu0 %v697
    %915 = vmatprep.subr.mxu0 0.0
    %916 = vmatpush1.msra.mxu0 %v696
    %917 = vmatprep.subr.mxu0 0.0
    %918 = vmatpush1.msra.mxu0 %v695
    %919 = vmatprep.subr.mxu0 0.0
    %920 = vmatpush1.msra.mxu0 %v694
    %921 = vmatprep.subr.mxu0 0.0
    %922 = vmatpush1.msra.mxu0 %v693
    %923 = vmatprep.subr.mxu0 0.0
    %924 = vmatpush1.msra.mxu0 %v692
    %925 = vmatprep.subr.mxu0 0.0
    %926 = vmatpush1.msra.mxu0 %v691
    %927 = vmatprep.subr.mxu0 0.0
    %928 = vmatpush1.msra.mxu0 %v690
    %929 = vmatprep.subr.mxu0 0.0
    %930 = vmatpush2.msra.mxu0 0.0
    %931 = vmatprep.subr.mxu0 0.0
    %932 = vmatpush2.msra.mxu0 0.0
    %933 = vmatprep.subr.mxu0 0.0
    %934 = vmatpush2.msra.mxu0 0.0
    %935 = vmatprep.subr.mxu0 0.0
    %936 = vmatpush2.msra.mxu0 0.0
    %937 = vmatprep.subr.mxu0 0.0
    %938 = vmatpush2.msra.mxu0 0.0
    %939 = vmatprep.subr.mxu0 0.0
    %940 = vmatpush2.msra.mxu0 0.0
    %941 = vmatprep.subr.mxu0 0.0
    %942 = vmatpush2.msra.mxu0 0.0
    %943 = vmatprep.subr.mxu0 0.0
    %944 = vmatpush2.msra.mxu0 0.0
    %945 = vmatprep.subr.mxu0 0.0
    %946 = vmatpush2.msra.mxu0 0.0
    %947 = vmatprep.subr.mxu0 0.0
    %948 = vmatpush2.msra.mxu0 0.0
    %949 = vmatprep.subr.mxu0 0.0
    %950 = vmatpush2.msra.mxu0 0.0
    %951 = vmatprep.subr.mxu0 0.0
    %952 = vmatpush2.msra.mxu0 0.0
    %953 = vmatprep.subr.mxu0 0.0
    %954 = vmatpush2.msra.mxu0 0.0
    %955 = vmatprep.subr.mxu0 0.0
    %956 = vmatpush2.msra.mxu0 0.0
    %957 = vmatprep.subr.mxu0 0.0
    %958 = vmatpush2.msra.mxu0 0.0
    %959 = vmatprep.subr.mxu0 0.0
    %960 = vmatpush2.msra.mxu0 0.0
    %961 = vmatprep.mubr.f32.mxu0 0.0
    %962 = vmatmul.mubr.f32.gmra.mxu0 %v895
    %v963 = vpop.f32.mrf.mxu0
    %v964 = vadd.f32 %v893, %v963
    %v965 = vpop.f32.mrf.mxu0
    %966 = vdwg.mxu0
    %v967 = vmax.f32 %v964, 0.0
    %976 = vrot.lane.b32.xlu0 %v690, 64
    %v977 = vpop.permute.xlu0 %976
    %978 = vrot.lane.b32.xlu0 %v691, 64
    %v979 = vpop.permute.xlu0 %978
    %980 = vrot.lane.b32.xlu0 %v692, 64
    %v981 = vpop.permute.xlu0 %980
    %982 = vrot.lane.b32.xlu0 %v693, 64
    %v983 = vpop.permute.xlu0 %982
    %984 = vrot.lane.b32.xlu0 %v694, 64
    %v985 = vpop.permute.xlu0 %984
    %986 = vrot.lane.b32.xlu0 %v695, 64
    %v987 = vpop.permute.xlu0 %986
    %988 = vrot.lane.b32.xlu0 %v696, 64
    %v989 = vpop.permute.xlu0 %988
    %990 = vrot.lane.b32.xlu0 %v697, 64
    %v991 = vpop.permute.xlu0 %990
    %1001 = vrot.lane.b32.xlu0 %v893, 64
    %v1002 = vpop.permute.xlu0 %1001
    %v1005 = vsel %vm705, %v967, 0
    %1007 = vmatprep.subr.mxu0 0.0
    %1008 = vmatpush1.msra.mxu0 0.0
    %1009 = vmatprep.subr.mxu0 0.0
    %1010 = vmatpush1.msra.mxu0 0.0
    %1011 = vmatprep.subr.mxu0 0.0
    %1012 = vmatpush1.msra.mxu0 0.0
    %1013 = vmatprep.subr.mxu0 0.0
    %1014 = vmatpush1.msra.mxu0 0.0
    %1015 = vmatprep.subr.mxu0 0.0
    %1016 = vmatpush1.msra.mxu0 0.0
    %1017 = vmatprep.subr.mxu0 0.0
    %1018 = vmatpush1.msra.mxu0 0.0
    %1019 = vmatprep.subr.mxu0 0.0
    %1020 = vmatpush1.msra.mxu0 0.0
    %1021 = vmatprep.subr.mxu0 0.0
    %1022 = vmatpush1.msra.mxu0 0.0
    %1023 = vmatprep.subr.mxu0 0.0
    %1024 = vmatpush1.msra.mxu0 %v991
    %1025 = vmatprep.subr.mxu0 0.0
    %1026 = vmatpush1.msra.mxu0 %v989
    %1027 = vmatprep.subr.mxu0 0.0
    %1028 = vmatpush1.msra.mxu0 %v987
    %1029 = vmatprep.subr.mxu0 0.0
    %1030 = vmatpush1.msra.mxu0 %v985
    %1031 = vmatprep.subr.mxu0 0.0
    %1032 = vmatpush1.msra.mxu0 %v983
    %1033 = vmatprep.subr.mxu0 0.0
    %1034 = vmatpush1.msra.mxu0 %v981
    %1035 = vmatprep.subr.mxu0 0.0
    %1036 = vmatpush1.msra.mxu0 %v979
    %1037 = vmatprep.subr.mxu0 0.0
    %1038 = vmatpush1.msra.mxu0 %v977
    %1039 = vmatprep.subr.mxu0 0.0
    %1040 = vmatpush2.msra.mxu0 0.0
    %1041 = vmatprep.subr.mxu0 0.0
    %1042 = vmatpush2.msra.mxu0 0.0
    %1043 = vmatprep.subr.mxu0 0.0
    %1044 = vmatpush2.msra.mxu0 0.0
    %1045 = vmatprep.subr.mxu0 0.0
    %1046 = vmatpush2.msra.mxu0 0.0
    %1047 = vmatprep.subr.mxu0 0.0
    %1048 = vmatpush2.msra.mxu0 0.0
    %1049 = vmatprep.subr.mxu0 0.0
    %1050 = vmatpush2.msra.mxu0 0.0
    %1051 = vmatprep.subr.mxu0 0.0
    %1052 = vmatpush2.msra.mxu0 0.0
    %1053 = vmatprep.subr.mxu0 0.0
    %1054 = vmatpush2.msra.mxu0 0.0
    %1055 = vmatprep.subr.mxu0 0.0
    %1056 = vmatpush2.msra.mxu0 0.0
    %1057 = vmatprep.subr.mxu0 0.0
    %1058 = vmatpush2.msra.mxu0 0.0
    %1059 = vmatprep.subr.mxu0 0.0
    %1060 = vmatpush2.msra.mxu0 0.0
    %1061 = vmatprep.subr.mxu0 0.0
    %1062 = vmatpush2.msra.mxu0 0.0
    %1063 = vmatprep.subr.mxu0 0.0
    %1064 = vmatpush2.msra.mxu0 0.0
    %1065 = vmatprep.subr.mxu0 0.0
    %1066 = vmatpush2.msra.mxu0 0.0
    %1067 = vmatprep.subr.mxu0 0.0
    %1068 = vmatpush2.msra.mxu0 0.0
    %1069 = vmatprep.subr.mxu0 0.0
    %1070 = vmatpush2.msra.mxu0 0.0
    %1071 = vmatprep.mubr.f32.mxu0 0.0
    %1072 = vmatmul.mubr.f32.gmra.mxu0 %v1005
    %v1073 = vpop.f32.mrf.mxu0
    %v1074 = vadd.f32 %v1002, %v1073
    %v1075 = vpop.f32.mrf.mxu0
    %1076 = vdwg.mxu0
    %v1077 = vmax.f32 %v1074, 0.0
    %v1078 = vlaneseq
    %v1079 = vshrl.u32 %v1078, 7
    %v1080 = vsub.s32 0, %v1079
    %v1081 = vrot.slane %v700, %v1080
    %v1082 = vmul.f32 %v1077, %v1081
    %vm1083 = vcmask 517120
    %v1084 = vsel %vm1083, %v1082, 0.0
    %1085 = vadd.xlane.f32.xlu0 %v1084
    %v1086 = vpop.xlane.xlu0 %1085
    %v1087 = vadd.f32 %v1086, %v1081
    %1089 = vrot.lane.b32.xlu0 %v1087, 64
    %v1090 = vpop.permute.xlu0 %1089
    %vm1092 = vcmask 1024
    %1093 = vst.msk [vmem:[%s3] sm:$0x3] %vm1092, %v1090
    // Predicated region
    $region18: #{forward.1} parent=1 // pred_check
      _
    $region19: #{forward.1} parent=1 // pred_check_branch
      %1095 = sbr.rel (0) target = $region21
    $region20: #{forward.1} parent=1 // pred_region
      _
    $region21: #{forward.1} parent=1 // pred_fallthru
      _
    // Predicated region
    $region22: #{forward.1} parent=1 // pred_check
      _
    $region23: #{forward.1} parent=1 // pred_check_branch
      %1097 = sbr.rel (0) target = $region25
    $region24: #{forward.1} parent=1 // pred_region
      _
    $region25: #{forward.1} parent=1 // pred_fallthru
      _
    %1098 = vsyncpa [#allocation3], 1

</llo_original>
